<compile_context>
chip_gen: v7x
topology: tpu7x:2x2x1
jax: 0.10.0
libtpu: 0.0.40
codegen_flags: <defaults>
</compile_context>

<pallas_src>
import math
import functools

import jax
import jax.numpy as jnp
from jax import lax
from jax.experimental import pallas as pl
from jax.experimental.pallas import tpu as pltpu

LN_EPS = 1e-5  # torch.nn.LayerNorm default
_SQRT_2_OVER_PI = math.sqrt(2.0 / math.pi)


def _layernorm(x, w, b):
    mu = jnp.mean(x, axis=-1, keepdims=True)
    xc = x - mu
    var = jnp.mean(xc * xc, axis=-1, keepdims=True)
    return xc * lax.rsqrt(var + LN_EPS) * w + b


def _gelu_tanh(x):
    # tanh-form GELU: runs on the EUP instead of ~12 VALU ops of the rational erf.
    return 0.5 * x * (1.0 + jnp.tanh(_SQRT_2_OVER_PI * (x + 0.044715 * x * x * x)))


def _patch_block_kernel(num_heads, nxp, compute_dtype,
                        x_ref, cls_ref,
                        ln1w_ref, ln1b_ref,
                        wqkv_ref, wp_ref, bp_ref,
                        ln2w_ref, ln2b_ref,
                        w1_ref, b1_ref, w2_ref, b2_ref,
                        out_ref,
                        u_scr, o_scr):
    bt, nx, C = x_ref.shape
    npad = u_scr.shape[1]
    H = num_heads
    dh = C // H
    cd = compute_dtype

    # ---- Assemble padded tokens in VMEM (no padded concat round-trip in HBM) ----
    # Row layout per batch element:
    #   [patch_0 .. patch_{nx-1}, zero pad .. nxp-1, cls at row nxp, zero pad .. npad-1]
    u_scr[:, :nx, :] = x_ref[...].astype(u_scr.dtype)
    if nxp > nx:
        u_scr[:, nx:nxp, :] = jnp.zeros((bt, nxp - nx, C), u_scr.dtype)
    u_scr[:, nxp:nxp + 1, :] = cls_ref[...].astype(u_scr.dtype)
    u_scr[:, nxp + 1:, :] = jnp.zeros((bt, npad - nxp - 1, C), u_scr.dtype)

    u3 = u_scr[...]                                    # (bt, npad, C)  f32
    u_flat = u3.reshape(bt * npad, C)                  # npad % 8 == 0 -> layout safe

    # ---- LayerNorm 1 (f32 stats) + fused QKV GEMM (cd operands, f32 accumulate) --
    n_u = _layernorm(u_flat, ln1w_ref[...], ln1b_ref[...])
    qkv = jnp.dot(n_u.astype(cd), wqkv_ref[...],
                  preferred_element_type=jnp.float32)  # (bt*npad, 3C)

    q3 = qkv[:, :C].reshape(bt, npad, C)[:, :nxp, :]   # queries: patch rows only
    k3 = qkv[:, C:2 * C].reshape(bt, npad, C)          # keys: patches + cls + pad
    v3 = qkv[:, 2 * C:].reshape(bt, npad, C)

    # Valid keys are the true patch tokens [0, nx) plus the cls token at row nxp;
    # the zero-padded rows are removed from the softmax via a -1e30 bias.
    kidx = lax.broadcasted_iota(jnp.int32, (1, 1, npad), 2)
    kbias = jnp.where((kidx < nx) | (kidx == nxp), 0.0, -1e30)

    # ---- Per-head attention; each head's output lands at its lane offset ---------
    for h in range(H):                                 # static unroll over heads
        sl = slice(h * dh, (h + 1) * dh)
        qh = q3[:, :, sl].astype(cd)                   # (bt, nxp,  dh)
        kh = k3[:, :, sl].astype(cd)                   # (bt, npad, dh)
        vh = v3[:, :, sl].astype(cd)
        s = jnp.einsum('bqd,bkd->bqk', qh, kh,
                       preferred_element_type=jnp.float32) + kbias
        m = jnp.max(s, axis=-1, keepdims=True)
        e = jnp.exp(s - m)
        p = e * pl.reciprocal(jnp.sum(e, axis=-1, keepdims=True), approx=True)
        o = jnp.einsum('bqk,bkd->bqd', p.astype(cd), vh,
                       preferred_element_type=jnp.float32)        # (bt, nxp, dh)
        o_scr[:, sl] = o.reshape(bt * nxp, dh).astype(cd)

    # Single full-K output projection (replaces H small-K per-head GEMMs).
    y = jnp.dot(o_scr[...], wp_ref[...],
                preferred_element_type=jnp.float32) + bp_ref[...]

    # ---- Residual 1 (DropPath == identity), MLP branch, residual 2 ---------------
    x_flat = u3[:, :nxp, :].reshape(bt * nxp, C)
    x1 = x_flat + y

    n2 = _layernorm(x1, ln2w_ref[...], ln2b_ref[...])
    h1 = jnp.dot(n2.astype(cd), w1_ref[...],
                 preferred_element_type=jnp.float32) + b1_ref[...]
    h1 = _gelu_tanh(h1)                                # f32 elementwise (v5e-safe)
    # TODO(synk): on v7x with large hidden, chunk the fc1/fc2 hidden dim so h1 never
    #             materializes at full width (64 MiB VMEM budget).
    h2 = jnp.dot(h1.astype(cd), w2_ref[...],
                 preferred_element_type=jnp.float32) + b2_ref[...]

    res = (x1 + h2).reshape(bt, nxp, C)
    out_ref[...] = res[:, :nx, :].astype(out_ref.dtype)


def patch_block(x_cls, x, params, num_heads, *, batch_tile=None,
                compute_dtype=jnp.bfloat16):
    """x_cls: (B, 1, C), x: (B, Nx, C) -> (B, Nx, C)."""
    B, Nx, C = x.shape
    assert x_cls.shape == (B, 1, C)
    assert C % num_heads == 0
    hidden = params["w1"].shape[1]
    scale = (C // num_heads) ** -0.5
    cd = compute_dtype

    # Fold the attention scale into Wq, fuse Q/K/V into one (C, 3C) GEMM, and
    # pre-cast all GEMM weights to the compute dtype (halves weight DMA / VMEM).
    wqkv = jnp.concatenate(
        [params["wq"] * scale, params["wk"], params["wv"]], axis=1).astype(cd)
    wp = params["wp"].astype(cd)
    w1 = params["w1"].astype(cd)
    w2 = params["w2"].astype(cd)

    # Token padding layout (all inside the kernel; nothing padded in HBM):
    nxp = ((Nx + 7) // 8) * 8          # patch rows padded to a sublane multiple
    npad = nxp + 8                     # + one 8-row tile holding cls + zero pad

    # Static (constructor-only) check for single-buffered weight BlockSpecs.
    single_buffer_weights = False
    if hasattr(pl, "Buffered"):
        try:
            pl.BlockSpec((1, 1), lambda b: (0, 0), pipeline_mode=pl.Buffered(1))
            single_buffer_weights = True
        except TypeError:
            single_buffer_weights = False

    # --- VMEM budget (per-generation via get_tpu_info) and batch-tile choice ------
    cd_bytes = jnp.dtype(cd).itemsize
    in_bytes = jnp.dtype(x.dtype).itemsize
    w_bytes = ((3 * C * C + C * C + C * hidden + hidden * C) * cd_bytes
               + (6 * C + hidden) * 4)
    w_mult = 1 if single_buffer_weights else 2

    def _step_bytes(bt_):
        rows_u, rows_x = bt_ * npad, bt_ * nxp
        act = (rows_u * C * 4                        # u scratch (f32)
               + rows_u * 3 * C * (4 + cd_bytes)     # qkv f32 + cd casts
               + rows_x * C * (3 * 4 + cd_bytes)     # y / x1 / n2 (f32) + o_scr (cd)
               + rows_x * hidden * (4 + cd_bytes)    # h1 (f32) + cd cast for fc2
               + 3 * bt_ * nxp * npad * 4)           # s / e / p (one head, f32)
        io = 2 * (2 * bt_ * Nx * C + bt_ * C) * in_bytes   # double-buffered x/cls/out
        return act + io

    try:
        vmem_cap = int(pltpu.get_tpu_info().vmem_capacity_bytes)
    except Exception:
        vmem_cap = 64 * 2 ** 20        # conservative (v7x-sized) fallback
    budget = max(32 * 2 ** 20, int(0.85 * vmem_cap))

    if batch_tile is None:
        bt = 1
        for cand in (8, 4, 2):
            # Keep grid length >= 2 so both v7x TensorCores get work.
            if B % cand == 0 and B // cand >= 2:
                bt = cand
                break
        while bt > 1 and w_mult * w_bytes + _step_bytes(bt) > budget:
            bt = max(d for d in range(1, bt) if B % d == 0)
    else:
        bt = int(batch_tile)
    assert B % bt == 0, "batch_tile must divide the batch"

    def _wspec(shape):
        idx_map = lambda b: (0,) * len(shape)
        if single_buffer_weights:
            # Grid-invariant operands: one VMEM buffer, fetched once.
            return pl.BlockSpec(shape, idx_map, pipeline_mode=pl.Buffered(1))
        return pl.BlockSpec(shape, idx_map)

    kernel = functools.partial(_patch_block_kernel, num_heads, nxp, cd)

    grid_spec = pltpu.PrefetchScalarGridSpec(
        num_scalar_prefetch=0,
        grid=(B // bt,),
        in_specs=[
            pl.BlockSpec((bt, Nx, C), lambda b: (b, 0, 0)),   # patch tokens
            pl.BlockSpec((bt, 1, C), lambda b: (b, 0, 0)),    # cls token
            _wspec((1, C)), _wspec((1, C)),                   # ln1 w, b
            _wspec((C, 3 * C)),                               # fused Wqkv (cd)
            _wspec((C, C)), _wspec((1, C)),                   # Wproj (cd), bproj
            _wspec((1, C)), _wspec((1, C)),                   # ln2 w, b
            _wspec((C, hidden)), _wspec((1, hidden)),         # fc1 w (cd), b
            _wspec((hidden, C)), _wspec((1, C)),              # fc2 w (cd), b
        ],
        out_specs=pl.BlockSpec((bt, Nx, C), lambda b: (b, 0, 0)),
        scratch_shapes=[
            pltpu.VMEM((bt, npad, C), jnp.float32),   # padded tokens (patches + cls)
            pltpu.VMEM((bt * nxp, C), cd),            # per-head attn outputs (lane-concat)
        ],
    )

    fn = pl.pallas_call(
        kernel,
        out_shape=jax.ShapeDtypeStruct((B, Nx, C), x.dtype),
        grid_spec=grid_spec,
        compiler_params=pltpu.CompilerParams(
            dimension_semantics=("parallel",),
            vmem_limit_bytes=int(budget)),
    )
    return fn(x, x_cls,
              params["ln1_w"], params["ln1_b"],
              wqkv, wp, params["bp"],
              params["ln2_w"], params["ln2_b"],
              w1, params["b1"], w2, params["b2"])


def init_params(key, dim, mlp_ratio=4.0):
    hidden = int(dim * mlp_ratio)
    ks = jax.random.split(key, 6)

    def nrm(k, shape):
        return 0.02 * jax.random.normal(k, shape, jnp.float32)

    return dict(
        ln1_w=jnp.ones((1, dim), jnp.float32),
        ln1_b=jnp.zeros((1, dim), jnp.float32),
        wq=nrm(ks[0], (dim, dim)),          # qkv_bias=False (module default)
        wk=nrm(ks[1], (dim, dim)),
        wv=nrm(ks[2], (dim, dim)),
        wp=nrm(ks[3], (dim, dim)),
        bp=jnp.zeros((1, dim), jnp.float32),
        ln2_w=jnp.ones((1, dim), jnp.float32),
        ln2_b=jnp.zeros((1, dim), jnp.float32),
        w1=nrm(ks[4], (dim, hidden)),
        b1=jnp.zeros((1, hidden), jnp.float32),
        w2=nrm(ks[5], (hidden, dim)),
        b2=jnp.zeros((1, dim), jnp.float32),
    )


def _reference(x_cls, x, params, num_heads):
    """Pure-JAX f32 reference mirroring the PyTorch forward (eval / DropPath=id)."""
    B, Nx, C = x.shape
    dh = C // num_heads
    scale = dh ** -0.5
    u = jnp.concatenate([x_cls, x], axis=1)                   # (B, N, C)
    nu = _layernorm(u, params["ln1_w"][0], params["ln1_b"][0])
    q = (nu[:, 1:] @ params["wq"]) * scale
    k = nu @ params["wk"]
    v = nu @ params["wv"]
    split = lambda t: t.reshape(B, t.shape[1], num_heads, dh).transpose(0, 2, 1, 3)
    qh, kh, vh = split(q), split(k), split(v)
    attn = jax.nn.softmax(qh @ kh.transpose(0, 1, 3, 2), axis=-1)
    y = (attn @ vh).transpose(0, 2, 1, 3).reshape(B, Nx, C)
    y = y @ params["wp"] + params["bp"][0]
    x1 = x + y
    n2 = _layernorm(x1, params["ln2_w"][0], params["ln2_b"][0])
    h = jax.nn.gelu(n2 @ params["w1"] + params["b1"][0], approximate=False)
    return x1 + (h @ params["w2"] + params["b2"][0])


if __name__ == "__main__":
    # Small but lane/sublane-aligned shapes: 8 patch tokens + 1 cls token, dim 128.
    B, Nx, C, H = 2, 8, 128, 4
    key = jax.random.PRNGKey(0)
    k1, k2, k3 = jax.random.split(key, 3)
    x_cls = jax.random.normal(k1, (B, 1, C), jnp.float32)
    x = jax.random.normal(k2, (B, Nx, C), jnp.float32)
    params = init_params(k3, C, mlp_ratio=2.0)

    out = patch_block(x_cls, x, params, num_heads=H)
    out = jax.block_until_ready(out)

    ref = _reference(x_cls, x, params, H)
    assert out.shape == (B, Nx, C)
    max_err = float(jnp.max(jnp.abs(out - ref)))
    assert jnp.allclose(out, ref, atol=1e-2, rtol=1e-2), (
        f"kernel/reference mismatch, max abs err = {max_err}")

    print("KERNEL_OK")
</pallas_src>

<mosaic_0001>
module attributes {stable_mosaic.version = 11 : i64} {
  func.func @_patch_block_kernel(%arg0: i32, %arg1: memref<1x8x128xf32, #tpu.memory_space<vmem>>, %arg2: memref<1x1x128xf32, #tpu.memory_space<vmem>>, %arg3: memref<1x128xf32, #tpu.memory_space<vmem>>, %arg4: memref<1x128xf32, #tpu.memory_space<vmem>>, %arg5: memref<128x384xbf16, #tpu.memory_space<vmem>>, %arg6: memref<128x128xbf16, #tpu.memory_space<vmem>>, %arg7: memref<1x128xf32, #tpu.memory_space<vmem>>, %arg8: memref<1x128xf32, #tpu.memory_space<vmem>>, %arg9: memref<1x128xf32, #tpu.memory_space<vmem>>, %arg10: memref<128x256xbf16, #tpu.memory_space<vmem>>, %arg11: memref<1x256xf32, #tpu.memory_space<vmem>>, %arg12: memref<256x128xbf16, #tpu.memory_space<vmem>>, %arg13: memref<1x128xf32, #tpu.memory_space<vmem>>, %arg14: memref<1x8x128xf32, #tpu.memory_space<vmem>>, %arg15: memref<1x16x128xf32, #tpu.memory_space<vmem>>, %arg16: memref<8x128xbf16, #tpu.memory_space<vmem>>) attributes {dimension_semantics = [#tpu.dimension_semantics<parallel>], iteration_bounds = array<i64: 2>, scalar_prefetch = 0 : i64, scratch_operands = 2 : i64, tpu.core_type = #tpu.core_type<tc>, window_params = [{transform_indices = @transform_0, window_bounds = array<i64: 1, 8, 128>}, {transform_indices = @transform_1, window_bounds = array<i64: 1, 1, 128>}, {pipeline_mode = #tpu.pipeline_mode<synchronous>, transform_indices = @transform_2, window_bounds = array<i64: 1, 128>}, {pipeline_mode = #tpu.pipeline_mode<synchronous>, transform_indices = @transform_3, window_bounds = array<i64: 1, 128>}, {pipeline_mode = #tpu.pipeline_mode<synchronous>, transform_indices = @transform_4, window_bounds = array<i64: 128, 384>}, {pipeline_mode = #tpu.pipeline_mode<synchronous>, transform_indices = @transform_5, window_bounds = array<i64: 128, 128>}, {pipeline_mode = #tpu.pipeline_mode<synchronous>, transform_indices = @transform_6, window_bounds = array<i64: 1, 128>}, {pipeline_mode = #tpu.pipeline_mode<synchronous>, transform_indices = @transform_7, window_bounds = array<i64: 1, 128>}, {pipeline_mode = #tpu.pipeline_mode<synchronous>, transform_indices = @transform_8, window_bounds = array<i64: 1, 128>}, {pipeline_mode = #tpu.pipeline_mode<synchronous>, transform_indices = @transform_9, window_bounds = array<i64: 128, 256>}, {pipeline_mode = #tpu.pipeline_mode<synchronous>, transform_indices = @transform_10, window_bounds = array<i64: 1, 256>}, {pipeline_mode = #tpu.pipeline_mode<synchronous>, transform_indices = @transform_11, window_bounds = array<i64: 256, 128>}, {pipeline_mode = #tpu.pipeline_mode<synchronous>, transform_indices = @transform_12, window_bounds = array<i64: 1, 128>}, {transform_indices = @transform_13, window_bounds = array<i64: 1, 8, 128>}]} {
    %c0 = arith.constant 0 : index
    %c0_0 = arith.constant 0 : index
    %c0_1 = arith.constant 0 : index
    %0 = vector.load %arg1[%c0, %c0_0, %c0_1] : memref<1x8x128xf32, #tpu.memory_space<vmem>>, vector<1x8x128xf32>
    %c0_2 = arith.constant 0 : index
    %c0_3 = arith.constant 0 : index
    %c0_4 = arith.constant 0 : index
    %1 = vector.load %arg15[%c0_2, %c0_3, %c0_4] : memref<1x16x128xf32, #tpu.memory_space<vmem>>, vector<1x8x128xf32>
    tpu.vector_store %arg15[%c0_2, %c0_3, %c0_4], %0 {strides = array<i32>} : memref<1x16x128xf32, #tpu.memory_space<vmem>>, vector<1x8x128xf32>,
    %c0_5 = arith.constant 0 : index
    %c0_6 = arith.constant 0 : index
    %c0_7 = arith.constant 0 : index
    %2 = vector.load %arg2[%c0_5, %c0_6, %c0_7] : memref<1x1x128xf32, #tpu.memory_space<vmem>>, vector<1x1x128xf32>
    %c0_8 = arith.constant 0 : index
    %c8 = arith.constant 8 : index
    %c0_9 = arith.constant 0 : index
    %3 = vector.load %arg15[%c0_8, %c8, %c0_9] : memref<1x16x128xf32, #tpu.memory_space<vmem>>, vector<1x1x128xf32>
    tpu.vector_store %arg15[%c0_8, %c8, %c0_9], %2 {strides = array<i32>} : memref<1x16x128xf32, #tpu.memory_space<vmem>>, vector<1x1x128xf32>,
    %cst = arith.constant 0.000000e+00 : f32
    %4 = vector.broadcast %cst : f32 to vector<1x7x128xf32>
    %c0_10 = arith.constant 0 : index
    %c9 = arith.constant 9 : index
    %c0_11 = arith.constant 0 : index
    %5 = vector.load %arg15[%c0_10, %c9, %c0_11] : memref<1x16x128xf32, #tpu.memory_space<vmem>>, vector<1x7x128xf32>
    tpu.vector_store %arg15[%c0_10, %c9, %c0_11], %4 {strides = array<i32>} : memref<1x16x128xf32, #tpu.memory_space<vmem>>, vector<1x7x128xf32>,
    %c0_12 = arith.constant 0 : index
    %c0_13 = arith.constant 0 : index
    %c0_14 = arith.constant 0 : index
    %6 = vector.load %arg15[%c0_12, %c0_13, %c0_14] : memref<1x16x128xf32, #tpu.memory_space<vmem>>, vector<1x16x128xf32>
    %7 = vector.shape_cast %6 : vector<1x16x128xf32> to vector<16x128xf32>
    %c0_15 = arith.constant 0 : index
    %c0_16 = arith.constant 0 : index
    %8 = vector.load %arg3[%c0_15, %c0_16] : memref<1x128xf32, #tpu.memory_space<vmem>>, vector<1x128xf32>
    %c0_17 = arith.constant 0 : index
    %c0_18 = arith.constant 0 : index
    %9 = vector.load %arg4[%c0_17, %c0_18] : memref<1x128xf32, #tpu.memory_space<vmem>>, vector<1x128xf32>
    %cst_19 = arith.constant dense<0.000000e+00> : vector<16xf32>
    %10 = vector.multi_reduction <add>, %7, %cst_19 [1] : vector<16x128xf32> to vector<16xf32>
    %11 = vector.shape_cast %10 : vector<16xf32> to vector<16x1xf32>
    %cst_20 = arith.constant 1.280000e+02 : f32
    %12 = vector.broadcast %cst_20 : f32 to vector<16x1xf32>
    %13 = arith.divf %11, %12 : vector<16x1xf32>
    %14 = vector.broadcast %13 : vector<16x1xf32> to vector<16x128xf32>
    %15 = arith.subf %7, %14 : vector<16x128xf32>
    %16 = arith.mulf %15, %15 : vector<16x128xf32>
    %cst_21 = arith.constant dense<0.000000e+00> : vector<16xf32>
    %17 = vector.multi_reduction <add>, %16, %cst_21 [1] : vector<16x128xf32> to vector<16xf32>
    %18 = vector.shape_cast %17 : vector<16xf32> to vector<16x1xf32>
    %cst_22 = arith.constant 1.280000e+02 : f32
    %19 = vector.broadcast %cst_22 : f32 to vector<16x1xf32>
    %20 = arith.divf %18, %19 : vector<16x1xf32>
    %cst_23 = arith.constant 9.99999974E-6 : f32
    %21 = vector.broadcast %cst_23 : f32 to vector<16x1xf32>
    %22 = arith.addf %20, %21 : vector<16x1xf32>
    %23 = math.rsqrt %22 : vector<16x1xf32>
    %24 = vector.broadcast %23 : vector<16x1xf32> to vector<16x128xf32>
    %25 = arith.mulf %15, %24 : vector<16x128xf32>
    %26 = vector.broadcast %8 : vector<1x128xf32> to vector<16x128xf32>
    %27 = arith.mulf %25, %26 : vector<16x128xf32>
    %28 = vector.broadcast %9 : vector<1x128xf32> to vector<16x128xf32>
    %29 = arith.addf %27, %28 : vector<16x128xf32>
    %30 = arith.truncf %29 : vector<16x128xf32> to vector<16x128xbf16>
    %c0_24 = arith.constant 0 : index
    %c0_25 = arith.constant 0 : index
    %31 = vector.load %arg5[%c0_24, %c0_25] : memref<128x384xbf16, #tpu.memory_space<vmem>>, vector<128x384xbf16>
    %cst_26 = arith.constant dense<0.000000e+00> : vector<16x384xf32>
    %32 = tpu.matmul %30, %31, %cst_26 {dimension_numbers = #tpu.dot_dimension_numbers<[1], [0], [0], [1], [0, 0, 1, 1], [], []>} : vector<16x128xbf16>, vector<128x384xbf16>, vector<16x384xf32> -> vector<16x384xf32>
    %33 = vector.extract_strided_slice %32 {offsets = [0, 0], sizes = [16, 128], strides = [1, 1]} : vector<16x384xf32> to vector<16x128xf32>
    %34 = vector.shape_cast %33 : vector<16x128xf32> to vector<1x16x128xf32>
    %35 = vector.extract_strided_slice %34 {offsets = [0, 0, 0], sizes = [1, 8, 128], strides = [1, 1, 1]} : vector<1x16x128xf32> to vector<1x8x128xf32>
    %36 = vector.extract_strided_slice %32 {offsets = [0, 128], sizes = [16, 128], strides = [1, 1]} : vector<16x384xf32> to vector<16x128xf32>
    %37 = vector.shape_cast %36 : vector<16x128xf32> to vector<1x16x128xf32>
    %38 = vector.extract_strided_slice %32 {offsets = [0, 256], sizes = [16, 128], strides = [1, 1]} : vector<16x384xf32> to vector<16x128xf32>
    %39 = vector.shape_cast %38 : vector<16x128xf32> to vector<1x16x128xf32>
    %40 = tpu.iota {dimensions = array<i32: 2>} : vector<1x1x16xi32>
    %c8_i32 = arith.constant 8 : i32
    %41 = vector.broadcast %c8_i32 : i32 to vector<1x1x16xi32>
    %42 = arith.cmpi slt, %40, %41 : vector<1x1x16xi32>
    %c8_i32_27 = arith.constant 8 : i32
    %43 = vector.broadcast %c8_i32_27 : i32 to vector<1x1x16xi32>
    %44 = arith.cmpi eq, %40, %43 : vector<1x1x16xi32>
    %45 = arith.ori %42, %44 : vector<1x1x16xi1>
    %cst_28 = arith.constant 0.000000e+00 : f32
    %cst_29 = arith.constant -1.000000e+30 : f32
    %46 = vector.broadcast %cst_28 : f32 to vector<1x1x16xf32>
    %47 = vector.broadcast %cst_29 : f32 to vector<1x1x16xf32>
    %48 = arith.select %45, %46, %47 : vector<1x1x16xi1>, vector<1x1x16xf32>
    %49 = vector.extract_strided_slice %35 {offsets = [0, 0, 0], sizes = [1, 8, 32], strides = [1, 1, 1]} : vector<1x8x128xf32> to vector<1x8x32xf32>
    %50 = arith.truncf %49 : vector<1x8x32xf32> to vector<1x8x32xbf16>
    %51 = vector.extract_strided_slice %37 {offsets = [0, 0, 0], sizes = [1, 16, 32], strides = [1, 1, 1]} : vector<1x16x128xf32> to vector<1x16x32xf32>
    %52 = arith.truncf %51 : vector<1x16x32xf32> to vector<1x16x32xbf16>
    %53 = vector.extract_strided_slice %39 {offsets = [0, 0, 0], sizes = [1, 16, 32], strides = [1, 1, 1]} : vector<1x16x128xf32> to vector<1x16x32xf32>
    %54 = arith.truncf %53 : vector<1x16x32xf32> to vector<1x16x32xbf16>
    "tpu.trace_start"() <{level = 10 : i32, message = "bqd,bkd->bqk"}> : () -> ()
    %cst_30 = arith.constant dense<0.000000e+00> : vector<1x8x16xf32>
    %55 = tpu.matmul %50, %52, %cst_30 {dimension_numbers = #tpu.dot_dimension_numbers<[2], [2], [1], [1], [0, 0, 0, 1, 1, 1], [0], [0]>} : vector<1x8x32xbf16>, vector<1x16x32xbf16>, vector<1x8x16xf32> -> vector<1x8x16xf32>
    "tpu.trace_stop"() : () -> ()
    %56 = vector.broadcast %48 : vector<1x1x16xf32> to vector<1x8x16xf32>
    %57 = arith.addf %55, %56 : vector<1x8x16xf32>
    %cst_31 = arith.constant dense<0xFF800000> : vector<1x8xf32>
    %58 = vector.multi_reduction <maximumf>, %57, %cst_31 [2] : vector<1x8x16xf32> to vector<1x8xf32>
    %59 = vector.shape_cast %58 : vector<1x8xf32> to vector<1x8x1xf32>
    %60 = vector.broadcast %59 : vector<1x8x1xf32> to vector<1x8x16xf32>
    %61 = arith.subf %57, %60 : vector<1x8x16xf32>
    %62 = math.exp %61 : vector<1x8x16xf32>
    %cst_32 = arith.constant dense<0.000000e+00> : vector<1x8xf32>
    %63 = vector.multi_reduction <add>, %62, %cst_32 [2] : vector<1x8x16xf32> to vector<1x8xf32>
    %64 = vector.shape_cast %63 : vector<1x8xf32> to vector<1x8x1xf32>
    %65 = tpu.reciprocal %64 {approx = true} : vector<1x8x1xf32> -> vector<1x8x1xf32>
    %66 = vector.broadcast %65 : vector<1x8x1xf32> to vector<1x8x16xf32>
    %67 = arith.mulf %62, %66 : vector<1x8x16xf32>
    %68 = arith.truncf %67 : vector<1x8x16xf32> to vector<1x8x16xbf16>
    "tpu.trace_start"() <{level = 10 : i32, message = "bqk,bkd->bqd"}> : () -> ()
    %cst_33 = arith.constant dense<0.000000e+00> : vector<1x8x32xf32>
    %69 = tpu.matmul %68, %54, %cst_33 {dimension_numbers = #tpu.dot_dimension_numbers<[2], [1], [1], [2], [0, 0, 0, 1, 1, 2], [0], [0]>} : vector<1x8x16xbf16>, vector<1x16x32xbf16>, vector<1x8x32xf32> -> vector<1x8x32xf32>
    "tpu.trace_stop"() : () -> ()
    %70 = vector.shape_cast %69 : vector<1x8x32xf32> to vector<8x32xf32>
    %71 = arith.truncf %70 : vector<8x32xf32> to vector<8x32xbf16>
    %c0_34 = arith.constant 0 : index
    %c0_35 = arith.constant 0 : index
    %72 = vector.load %arg16[%c0_34, %c0_35] : memref<8x128xbf16, #tpu.memory_space<vmem>>, vector<8x32xbf16>
    tpu.vector_store %arg16[%c0_34, %c0_35], %71 {strides = array<i32>} : memref<8x128xbf16, #tpu.memory_space<vmem>>, vector<8x32xbf16>,
    %73 = vector.extract_strided_slice %35 {offsets = [0, 0, 32], sizes = [1, 8, 32], strides = [1, 1, 1]} : vector<1x8x128xf32> to vector<1x8x32xf32>
    %74 = arith.truncf %73 : vector<1x8x32xf32> to vector<1x8x32xbf16>
    %75 = vector.extract_strided_slice %37 {offsets = [0, 0, 32], sizes = [1, 16, 32], strides = [1, 1, 1]} : vector<1x16x128xf32> to vector<1x16x32xf32>
    %76 = arith.truncf %75 : vector<1x16x32xf32> to vector<1x16x32xbf16>
    %77 = vector.extract_strided_slice %39 {offsets = [0, 0, 32], sizes = [1, 16, 32], strides = [1, 1, 1]} : vector<1x16x128xf32> to vector<1x16x32xf32>
    %78 = arith.truncf %77 : vector<1x16x32xf32> to vector<1x16x32xbf16>
    "tpu.trace_start"() <{level = 10 : i32, message = "bqd,bkd->bqk"}> : () -> ()
    %cst_36 = arith.constant dense<0.000000e+00> : vector<1x8x16xf32>
    %79 = tpu.matmul %74, %76, %cst_36 {dimension_numbers = #tpu.dot_dimension_numbers<[2], [2], [1], [1], [0, 0, 0, 1, 1, 1], [0], [0]>} : vector<1x8x32xbf16>, vector<1x16x32xbf16>, vector<1x8x16xf32> -> vector<1x8x16xf32>
    "tpu.trace_stop"() : () -> ()
    %80 = vector.broadcast %48 : vector<1x1x16xf32> to vector<1x8x16xf32>
    %81 = arith.addf %79, %80 : vector<1x8x16xf32>
    %cst_37 = arith.constant dense<0xFF800000> : vector<1x8xf32>
    %82 = vector.multi_reduction <maximumf>, %81, %cst_37 [2] : vector<1x8x16xf32> to vector<1x8xf32>
    %83 = vector.shape_cast %82 : vector<1x8xf32> to vector<1x8x1xf32>
    %84 = vector.broadcast %83 : vector<1x8x1xf32> to vector<1x8x16xf32>
    %85 = arith.subf %81, %84 : vector<1x8x16xf32>
    %86 = math.exp %85 : vector<1x8x16xf32>
    %cst_38 = arith.constant dense<0.000000e+00> : vector<1x8xf32>
    %87 = vector.multi_reduction <add>, %86, %cst_38 [2] : vector<1x8x16xf32> to vector<1x8xf32>
    %88 = vector.shape_cast %87 : vector<1x8xf32> to vector<1x8x1xf32>
    %89 = tpu.reciprocal %88 {approx = true} : vector<1x8x1xf32> -> vector<1x8x1xf32>
    %90 = vector.broadcast %89 : vector<1x8x1xf32> to vector<1x8x16xf32>
    %91 = arith.mulf %86, %90 : vector<1x8x16xf32>
    %92 = arith.truncf %91 : vector<1x8x16xf32> to vector<1x8x16xbf16>
    "tpu.trace_start"() <{level = 10 : i32, message = "bqk,bkd->bqd"}> : () -> ()
    %cst_39 = arith.constant dense<0.000000e+00> : vector<1x8x32xf32>
    %93 = tpu.matmul %92, %78, %cst_39 {dimension_numbers = #tpu.dot_dimension_numbers<[2], [1], [1], [2], [0, 0, 0, 1, 1, 2], [0], [0]>} : vector<1x8x16xbf16>, vector<1x16x32xbf16>, vector<1x8x32xf32> -> vector<1x8x32xf32>
    "tpu.trace_stop"() : () -> ()
    %94 = vector.shape_cast %93 : vector<1x8x32xf32> to vector<8x32xf32>
    %95 = arith.truncf %94 : vector<8x32xf32> to vector<8x32xbf16>
    %c0_40 = arith.constant 0 : index
    %c32 = arith.constant 32 : index
    %96 = vector.load %arg16[%c0_40, %c32] : memref<8x128xbf16, #tpu.memory_space<vmem>>, vector<8x32xbf16>
    tpu.vector_store %arg16[%c0_40, %c32], %95 {strides = array<i32>} : memref<8x128xbf16, #tpu.memory_space<vmem>>, vector<8x32xbf16>,
    %97 = vector.extract_strided_slice %35 {offsets = [0, 0, 64], sizes = [1, 8, 32], strides = [1, 1, 1]} : vector<1x8x128xf32> to vector<1x8x32xf32>
    %98 = arith.truncf %97 : vector<1x8x32xf32> to vector<1x8x32xbf16>
    %99 = vector.extract_strided_slice %37 {offsets = [0, 0, 64], sizes = [1, 16, 32], strides = [1, 1, 1]} : vector<1x16x128xf32> to vector<1x16x32xf32>
    %100 = arith.truncf %99 : vector<1x16x32xf32> to vector<1x16x32xbf16>
    %101 = vector.extract_strided_slice %39 {offsets = [0, 0, 64], sizes = [1, 16, 32], strides = [1, 1, 1]} : vector<1x16x128xf32> to vector<1x16x32xf32>
    %102 = arith.truncf %101 : vector<1x16x32xf32> to vector<1x16x32xbf16>
    "tpu.trace_start"() <{level = 10 : i32, message = "bqd,bkd->bqk"}> : () -> ()
    %cst_41 = arith.constant dense<0.000000e+00> : vector<1x8x16xf32>
    %103 = tpu.matmul %98, %100, %cst_41 {dimension_numbers = #tpu.dot_dimension_numbers<[2], [2], [1], [1], [0, 0, 0, 1, 1, 1], [0], [0]>} : vector<1x8x32xbf16>, vector<1x16x32xbf16>, vector<1x8x16xf32> -> vector<1x8x16xf32>
    "tpu.trace_stop"() : () -> ()
    %104 = vector.broadcast %48 : vector<1x1x16xf32> to vector<1x8x16xf32>
    %105 = arith.addf %103, %104 : vector<1x8x16xf32>
    %cst_42 = arith.constant dense<0xFF800000> : vector<1x8xf32>
    %106 = vector.multi_reduction <maximumf>, %105, %cst_42 [2] : vector<1x8x16xf32> to vector<1x8xf32>
    %107 = vector.shape_cast %106 : vector<1x8xf32> to vector<1x8x1xf32>
    %108 = vector.broadcast %107 : vector<1x8x1xf32> to vector<1x8x16xf32>
    %109 = arith.subf %105, %108 : vector<1x8x16xf32>
    %110 = math.exp %109 : vector<1x8x16xf32>
    %cst_43 = arith.constant dense<0.000000e+00> : vector<1x8xf32>
    %111 = vector.multi_reduction <add>, %110, %cst_43 [2] : vector<1x8x16xf32> to vector<1x8xf32>
    %112 = vector.shape_cast %111 : vector<1x8xf32> to vector<1x8x1xf32>
    %113 = tpu.reciprocal %112 {approx = true} : vector<1x8x1xf32> -> vector<1x8x1xf32>
    %114 = vector.broadcast %113 : vector<1x8x1xf32> to vector<1x8x16xf32>
    %115 = arith.mulf %110, %114 : vector<1x8x16xf32>
    %116 = arith.truncf %115 : vector<1x8x16xf32> to vector<1x8x16xbf16>
    "tpu.trace_start"() <{level = 10 : i32, message = "bqk,bkd->bqd"}> : () -> ()
    %cst_44 = arith.constant dense<0.000000e+00> : vector<1x8x32xf32>
    %117 = tpu.matmul %116, %102, %cst_44 {dimension_numbers = #tpu.dot_dimension_numbers<[2], [1], [1], [2], [0, 0, 0, 1, 1, 2], [0], [0]>} : vector<1x8x16xbf16>, vector<1x16x32xbf16>, vector<1x8x32xf32> -> vector<1x8x32xf32>
    "tpu.trace_stop"() : () -> ()
    %118 = vector.shape_cast %117 : vector<1x8x32xf32> to vector<8x32xf32>
    %119 = arith.truncf %118 : vector<8x32xf32> to vector<8x32xbf16>
    %c0_45 = arith.constant 0 : index
    %c64 = arith.constant 64 : index
    %120 = vector.load %arg16[%c0_45, %c64] : memref<8x128xbf16, #tpu.memory_space<vmem>>, vector<8x32xbf16>
    tpu.vector_store %arg16[%c0_45, %c64], %119 {strides = array<i32>} : memref<8x128xbf16, #tpu.memory_space<vmem>>, vector<8x32xbf16>,
    %121 = vector.extract_strided_slice %35 {offsets = [0, 0, 96], sizes = [1, 8, 32], strides = [1, 1, 1]} : vector<1x8x128xf32> to vector<1x8x32xf32>
    %122 = arith.truncf %121 : vector<1x8x32xf32> to vector<1x8x32xbf16>
    %123 = vector.extract_strided_slice %37 {offsets = [0, 0, 96], sizes = [1, 16, 32], strides = [1, 1, 1]} : vector<1x16x128xf32> to vector<1x16x32xf32>
    %124 = arith.truncf %123 : vector<1x16x32xf32> to vector<1x16x32xbf16>
    %125 = vector.extract_strided_slice %39 {offsets = [0, 0, 96], sizes = [1, 16, 32], strides = [1, 1, 1]} : vector<1x16x128xf32> to vector<1x16x32xf32>
    %126 = arith.truncf %125 : vector<1x16x32xf32> to vector<1x16x32xbf16>
    "tpu.trace_start"() <{level = 10 : i32, message = "bqd,bkd->bqk"}> : () -> ()
    %cst_46 = arith.constant dense<0.000000e+00> : vector<1x8x16xf32>
    %127 = tpu.matmul %122, %124, %cst_46 {dimension_numbers = #tpu.dot_dimension_numbers<[2], [2], [1], [1], [0, 0, 0, 1, 1, 1], [0], [0]>} : vector<1x8x32xbf16>, vector<1x16x32xbf16>, vector<1x8x16xf32> -> vector<1x8x16xf32>
    "tpu.trace_stop"() : () -> ()
    %128 = vector.broadcast %48 : vector<1x1x16xf32> to vector<1x8x16xf32>
    %129 = arith.addf %127, %128 : vector<1x8x16xf32>
    %cst_47 = arith.constant dense<0xFF800000> : vector<1x8xf32>
    %130 = vector.multi_reduction <maximumf>, %129, %cst_47 [2] : vector<1x8x16xf32> to vector<1x8xf32>
    %131 = vector.shape_cast %130 : vector<1x8xf32> to vector<1x8x1xf32>
    %132 = vector.broadcast %131 : vector<1x8x1xf32> to vector<1x8x16xf32>
    %133 = arith.subf %129, %132 : vector<1x8x16xf32>
    %134 = math.exp %133 : vector<1x8x16xf32>
    %cst_48 = arith.constant dense<0.000000e+00> : vector<1x8xf32>
    %135 = vector.multi_reduction <add>, %134, %cst_48 [2] : vector<1x8x16xf32> to vector<1x8xf32>
    %136 = vector.shape_cast %135 : vector<1x8xf32> to vector<1x8x1xf32>
    %137 = tpu.reciprocal %136 {approx = true} : vector<1x8x1xf32> -> vector<1x8x1xf32>
    %138 = vector.broadcast %137 : vector<1x8x1xf32> to vector<1x8x16xf32>
    %139 = arith.mulf %134, %138 : vector<1x8x16xf32>
    %140 = arith.truncf %139 : vector<1x8x16xf32> to vector<1x8x16xbf16>
    "tpu.trace_start"() <{level = 10 : i32, message = "bqk,bkd->bqd"}> : () -> ()
    %cst_49 = arith.constant dense<0.000000e+00> : vector<1x8x32xf32>
    %141 = tpu.matmul %140, %126, %cst_49 {dimension_numbers = #tpu.dot_dimension_numbers<[2], [1], [1], [2], [0, 0, 0, 1, 1, 2], [0], [0]>} : vector<1x8x16xbf16>, vector<1x16x32xbf16>, vector<1x8x32xf32> -> vector<1x8x32xf32>
    "tpu.trace_stop"() : () -> ()
    %142 = vector.shape_cast %141 : vector<1x8x32xf32> to vector<8x32xf32>
    %143 = arith.truncf %142 : vector<8x32xf32> to vector<8x32xbf16>
    %c0_50 = arith.constant 0 : index
    %c96 = arith.constant 96 : index
    %144 = vector.load %arg16[%c0_50, %c96] : memref<8x128xbf16, #tpu.memory_space<vmem>>, vector<8x32xbf16>
    tpu.vector_store %arg16[%c0_50, %c96], %143 {strides = array<i32>} : memref<8x128xbf16, #tpu.memory_space<vmem>>, vector<8x32xbf16>,
    %c0_51 = arith.constant 0 : index
    %c0_52 = arith.constant 0 : index
    %145 = vector.load %arg16[%c0_51, %c0_52] : memref<8x128xbf16, #tpu.memory_space<vmem>>, vector<8x128xbf16>
    %c0_53 = arith.constant 0 : index
    %c0_54 = arith.constant 0 : index
    %146 = vector.load %arg6[%c0_53, %c0_54] : memref<128x128xbf16, #tpu.memory_space<vmem>>, vector<128x128xbf16>
    %cst_55 = arith.constant dense<0.000000e+00> : vector<8x128xf32>
    %147 = tpu.matmul %145, %146, %cst_55 {dimension_numbers = #tpu.dot_dimension_numbers<[1], [0], [0], [1], [0, 0, 1, 1], [], []>} : vector<8x128xbf16>, vector<128x128xbf16>, vector<8x128xf32> -> vector<8x128xf32>
    %c0_56 = arith.constant 0 : index
    %c0_57 = arith.constant 0 : index
    %148 = vector.load %arg7[%c0_56, %c0_57] : memref<1x128xf32, #tpu.memory_space<vmem>>, vector<1x128xf32>
    %149 = vector.broadcast %148 : vector<1x128xf32> to vector<8x128xf32>
    %150 = arith.addf %147, %149 : vector<8x128xf32>
    %151 = vector.extract_strided_slice %6 {offsets = [0, 0, 0], sizes = [1, 8, 128], strides = [1, 1, 1]} : vector<1x16x128xf32> to vector<1x8x128xf32>
    %152 = vector.shape_cast %151 : vector<1x8x128xf32> to vector<8x128xf32>
    %153 = arith.addf %152, %150 : vector<8x128xf32>
    %c0_58 = arith.constant 0 : index
    %c0_59 = arith.constant 0 : index
    %154 = vector.load %arg8[%c0_58, %c0_59] : memref<1x128xf32, #tpu.memory_space<vmem>>, vector<1x128xf32>
    %c0_60 = arith.constant 0 : index
    %c0_61 = arith.constant 0 : index
    %155 = vector.load %arg9[%c0_60, %c0_61] : memref<1x128xf32, #tpu.memory_space<vmem>>, vector<1x128xf32>
    %cst_62 = arith.constant dense<0.000000e+00> : vector<8xf32>
    %156 = vector.multi_reduction <add>, %153, %cst_62 [1] : vector<8x128xf32> to vector<8xf32>
    %157 = vector.shape_cast %156 : vector<8xf32> to vector<8x1xf32>
    %cst_63 = arith.constant 1.280000e+02 : f32
    %158 = vector.broadcast %cst_63 : f32 to vector<8x1xf32>
    %159 = arith.divf %157, %158 : vector<8x1xf32>
    %160 = vector.broadcast %159 : vector<8x1xf32> to vector<8x128xf32>
    %161 = arith.subf %153, %160 : vector<8x128xf32>
    %162 = arith.mulf %161, %161 : vector<8x128xf32>
    %cst_64 = arith.constant dense<0.000000e+00> : vector<8xf32>
    %163 = vector.multi_reduction <add>, %162, %cst_64 [1] : vector<8x128xf32> to vector<8xf32>
    %164 = vector.shape_cast %163 : vector<8xf32> to vector<8x1xf32>
    %cst_65 = arith.constant 1.280000e+02 : f32
    %165 = vector.broadcast %cst_65 : f32 to vector<8x1xf32>
    %166 = arith.divf %164, %165 : vector<8x1xf32>
    %cst_66 = arith.constant 9.99999974E-6 : f32
    %167 = vector.broadcast %cst_66 : f32 to vector<8x1xf32>
    %168 = arith.addf %166, %167 : vector<8x1xf32>
    %169 = math.rsqrt %168 : vector<8x1xf32>
    %170 = vector.broadcast %169 : vector<8x1xf32> to vector<8x128xf32>
    %171 = arith.mulf %161, %170 : vector<8x128xf32>
    %172 = vector.broadcast %154 : vector<1x128xf32> to vector<8x128xf32>
    %173 = arith.mulf %171, %172 : vector<8x128xf32>
    %174 = vector.broadcast %155 : vector<1x128xf32> to vector<8x128xf32>
    %175 = arith.addf %173, %174 : vector<8x128xf32>
    %176 = arith.truncf %175 : vector<8x128xf32> to vector<8x128xbf16>
    %c0_67 = arith.constant 0 : index
    %c0_68 = arith.constant 0 : index
    %177 = vector.load %arg10[%c0_67, %c0_68] : memref<128x256xbf16, #tpu.memory_space<vmem>>, vector<128x256xbf16>
    %cst_69 = arith.constant dense<0.000000e+00> : vector<8x256xf32>
    %178 = tpu.matmul %176, %177, %cst_69 {dimension_numbers = #tpu.dot_dimension_numbers<[1], [0], [0], [1], [0, 0, 1, 1], [], []>} : vector<8x128xbf16>, vector<128x256xbf16>, vector<8x256xf32> -> vector<8x256xf32>
    %c0_70 = arith.constant 0 : index
    %c0_71 = arith.constant 0 : index
    %179 = vector.load %arg11[%c0_70, %c0_71] : memref<1x256xf32, #tpu.memory_space<vmem>>, vector<1x256xf32>
    %180 = vector.broadcast %179 : vector<1x256xf32> to vector<8x256xf32>
    %181 = arith.addf %178, %180 : vector<8x256xf32>
    %cst_72 = arith.constant 5.000000e-01 : f32
    %182 = vector.broadcast %cst_72 : f32 to vector<8x256xf32>
    %183 = arith.mulf %182, %181 : vector<8x256xf32>
    %cst_73 = arith.constant 4.471500e-02 : f32
    %184 = vector.broadcast %cst_73 : f32 to vector<8x256xf32>
    %185 = arith.mulf %184, %181 : vector<8x256xf32>
    %186 = arith.mulf %185, %181 : vector<8x256xf32>
    %187 = arith.mulf %186, %181 : vector<8x256xf32>
    %188 = arith.addf %181, %187 : vector<8x256xf32>
    %cst_74 = arith.constant 0.797884583 : f32
    %189 = vector.broadcast %cst_74 : f32 to vector<8x256xf32>
    %190 = arith.mulf %189, %188 : vector<8x256xf32>
    %191 = math.tanh %190 : vector<8x256xf32>
    %cst_75 = arith.constant 1.000000e+00 : f32
    %192 = vector.broadcast %cst_75 : f32 to vector<8x256xf32>
    %193 = arith.addf %192, %191 : vector<8x256xf32>
    %194 = arith.mulf %183, %193 : vector<8x256xf32>
    %195 = arith.truncf %194 : vector<8x256xf32> to vector<8x256xbf16>
    %c0_76 = arith.constant 0 : index
    %c0_77 = arith.constant 0 : index
    %196 = vector.load %arg12[%c0_76, %c0_77] : memref<256x128xbf16, #tpu.memory_space<vmem>>, vector<256x128xbf16>
    %cst_78 = arith.constant dense<0.000000e+00> : vector<8x128xf32>
    %197 = tpu.matmul %195, %196, %cst_78 {dimension_numbers = #tpu.dot_dimension_numbers<[1], [0], [0], [1], [0, 0, 1, 1], [], []>} : vector<8x256xbf16>, vector<256x128xbf16>, vector<8x128xf32> -> vector<8x128xf32>
    %c0_79 = arith.constant 0 : index
    %c0_80 = arith.constant 0 : index
    %198 = vector.load %arg13[%c0_79, %c0_80] : memref<1x128xf32, #tpu.memory_space<vmem>>, vector<1x128xf32>
    %199 = vector.broadcast %198 : vector<1x128xf32> to vector<8x128xf32>
    %200 = arith.addf %197, %199 : vector<8x128xf32>
    %201 = arith.addf %153, %200 : vector<8x128xf32>
    %202 = vector.shape_cast %201 : vector<8x128xf32> to vector<1x8x128xf32>
    %c0_81 = arith.constant 0 : index
    %c0_82 = arith.constant 0 : index
    %c0_83 = arith.constant 0 : index
    %203 = vector.load %arg14[%c0_81, %c0_82, %c0_83] : memref<1x8x128xf32, #tpu.memory_space<vmem>>, vector<1x8x128xf32>
    tpu.vector_store %arg14[%c0_81, %c0_82, %c0_83], %202 {strides = array<i32>} : memref<1x8x128xf32, #tpu.memory_space<vmem>>, vector<1x8x128xf32>,
    return
  }
  func.func @transform_0(%arg0: i32) -> (i32, i32, i32) {
    %c0_i32 = arith.constant 0 : i32
    %c0_i32_0 = arith.constant 0 : i32
    %c0_i32_1 = arith.constant 0 : i32
    return %arg0, %c0_i32, %c0_i32_0 : i32, i32, i32
  }
  func.func @transform_1(%arg0: i32) -> (i32, i32, i32) {
    %c0_i32 = arith.constant 0 : i32
    %c0_i32_0 = arith.constant 0 : i32
    %c0_i32_1 = arith.constant 0 : i32
    return %arg0, %c0_i32, %c0_i32_0 : i32, i32, i32
  }
  func.func @transform_2(%arg0: i32) -> (i32, i32) {
    %c0_i32 = arith.constant 0 : i32
    %c0_i32_0 = arith.constant 0 : i32
    %c0_i32_1 = arith.constant 0 : i32
    return %c0_i32, %c0_i32_0 : i32, i32
  }
  func.func @transform_3(%arg0: i32) -> (i32, i32) {
    %c0_i32 = arith.constant 0 : i32
    %c0_i32_0 = arith.constant 0 : i32
    %c0_i32_1 = arith.constant 0 : i32
    return %c0_i32, %c0_i32_0 : i32, i32
  }
  func.func @transform_4(%arg0: i32) -> (i32, i32) {
    %c0_i32 = arith.constant 0 : i32
    %c0_i32_0 = arith.constant 0 : i32
    %c0_i32_1 = arith.constant 0 : i32
    return %c0_i32, %c0_i32_0 : i32, i32
  }
  func.func @transform_5(%arg0: i32) -> (i32, i32) {
    %c0_i32 = arith.constant 0 : i32
    %c0_i32_0 = arith.constant 0 : i32
    %c0_i32_1 = arith.constant 0 : i32
    return %c0_i32, %c0_i32_0 : i32, i32
  }
  func.func @transform_6(%arg0: i32) -> (i32, i32) {
    %c0_i32 = arith.constant 0 : i32
    %c0_i32_0 = arith.constant 0 : i32
    %c0_i32_1 = arith.constant 0 : i32
    return %c0_i32, %c0_i32_0 : i32, i32
  }
  func.func @transform_7(%arg0: i32) -> (i32, i32) {
    %c0_i32 = arith.constant 0 : i32
    %c0_i32_0 = arith.constant 0 : i32
    %c0_i32_1 = arith.constant 0 : i32
    return %c0_i32, %c0_i32_0 : i32, i32
  }
  func.func @transform_8(%arg0: i32) -> (i32, i32) {
    %c0_i32 = arith.constant 0 : i32
    %c0_i32_0 = arith.constant 0 : i32
    %c0_i32_1 = arith.constant 0 : i32
    return %c0_i32, %c0_i32_0 : i32, i32
  }
  func.func @transform_9(%arg0: i32) -> (i32, i32) {
    %c0_i32 = arith.constant 0 : i32
    %c0_i32_0 = arith.constant 0 : i32
    %c0_i32_1 = arith.constant 0 : i32
    return %c0_i32, %c0_i32_0 : i32, i32
  }
  func.func @transform_10(%arg0: i32) -> (i32, i32) {
    %c0_i32 = arith.constant 0 : i32
    %c0_i32_0 = arith.constant 0 : i32
    %c0_i32_1 = arith.constant 0 : i32
    return %c0_i32, %c0_i32_0 : i32, i32
  }
  func.func @transform_11(%arg0: i32) -> (i32, i32) {
    %c0_i32 = arith.constant 0 : i32
    %c0_i32_0 = arith.constant 0 : i32
    %c0_i32_1 = arith.constant 0 : i32
    return %c0_i32, %c0_i32_0 : i32, i32
  }
  func.func @transform_12(%arg0: i32) -> (i32, i32) {
    %c0_i32 = arith.constant 0 : i32
    %c0_i32_0 = arith.constant 0 : i32
    %c0_i32_1 = arith.constant 0 : i32
    return %c0_i32, %c0_i32_0 : i32, i32
  }
  func.func @transform_13(%arg0: i32) -> (i32, i32, i32) {
    %c0_i32 = arith.constant 0 : i32
    %c0_i32_0 = arith.constant 0 : i32
    %c0_i32_1 = arith.constant 0 : i32
    return %arg0, %c0_i32, %c0_i32_0 : i32, i32, i32
  }
}

</mosaic_0001>

<llo_original>
// kernel: tpu_custom_call.1
$region0: #{tpu_custom_call.1}
  #allocation0 [shape = 'u32[]', space=smem, size = 0x4, offset = 0x4, fixed_abs, tag = 'smem constant byte address 0x4 - core index']
  #allocation1 [shape = 'u32[144,128]{1,0:T(1,128)}', space=vmem, size = 0x12000, scoped, tag = 'internal scratch']
  #allocation2 [shape = 'f32[1,16,128]{2,1,0:T(8,128)}', space=vmem, size = 0x2000, scoped, tag = 'scratch operand']
  #allocation3 [shape = 'bf16[8,128]{1,0:T(8,128)(2,1)}', space=vmem, size = 0x800, scoped, tag = 'scratch operand']
  %s0 = inlined_call_operand.hbm [shape: f32[2,8,128], index: 0, kind: input, shape index: {}]
  %s1 = inlined_call_operand.vmem [shape: f32[2,1,128], index: 1, kind: input, shape index: {}]
  %s2 = inlined_call_operand.vmem [shape: f32[1,128], index: 2, kind: input, shape index: {}]
  %s3 = inlined_call_operand.vmem [shape: f32[1,128], index: 3, kind: input, shape index: {}]
  %s4 = inlined_call_operand.hbm [shape: bf16[128,384], index: 4, kind: input, shape index: {}]
  %s5 = inlined_call_operand.hbm [shape: bf16[128,128], index: 5, kind: input, shape index: {}]
  %s6 = inlined_call_operand.vmem [shape: f32[1,128], index: 6, kind: input, shape index: {}]
  %s7 = inlined_call_operand.vmem [shape: f32[1,128], index: 7, kind: input, shape index: {}]
  %s8 = inlined_call_operand.vmem [shape: f32[1,128], index: 8, kind: input, shape index: {}]
  %s9 = inlined_call_operand.hbm [shape: bf16[128,256], index: 9, kind: input, shape index: {}]
  %s10 = inlined_call_operand.vmem [shape: f32[1,256], index: 10, kind: input, shape index: {}]
  %s11 = inlined_call_operand.hbm [shape: bf16[256,128], index: 11, kind: input, shape index: {}]
  %s12 = inlined_call_operand.vmem [shape: f32[1,128], index: 12, kind: input, shape index: {}]
  %s13 = inlined_call_operand.hbm [shape: f32[2,8,128], index: 13, kind: output, shape index: {}]
  %s14 = sld [smem:[#allocation0]]
  $region105: #{tpu_custom_call.1} parent=0
    _
  %s16 = ssub.s32 1, %s14
  %s17 = scalar_select 0, %s16, %s14
  $region1: #{tpu_custom_call.1} parent=0
    #allocation4 [shape = 'u8[8192]{0}', space=vmem, size = 0x2000, scoped, tag = 'input window, operand 0']
    #allocation5 [shape = 's32[2]{0}', space=sflag, size = 0x8, scoped, tag = 'scoped memory for tpu_custom_call.1']
    #allocation6 [shape = 's32[2]{0}', space=sflag, size = 0x8, scoped, tag = 'scoped memory for tpu_custom_call.1']
    #allocation7 [shape = 'u8[98304]{0}', space=vmem, size = 0x18000, scoped, tag = 'input window, operand 4, single buffered']
    #allocation8 [shape = 's32[1]{0}', space=sflag, size = 0x4, scoped, tag = 'scoped memory for tpu_custom_call.1']
    #allocation9 [shape = 'u8[32768]{0}', space=vmem, size = 0x8000, scoped, tag = 'input window, operand 5, single buffered']
    #allocation10 [shape = 'u8[65536]{0}', space=vmem, size = 0x10000, scoped, tag = 'input window, operand 9, single buffered']
    #allocation11 [shape = 's32[1]{0}', space=sflag, size = 0x4, scoped, tag = 'scoped memory for tpu_custom_call.1']
    #allocation12 [shape = 'u8[65536]{0}', space=vmem, size = 0x10000, scoped, tag = 'input window, operand 11, single buffered']
    #allocation13 [shape = 'u8[8192]{0}', space=vmem, size = 0x2000, scoped, tag = 'output window, operand 0']
    %18 = vsyncpa [#allocation5], 0
    %s19 = scalar_lea.sflag [#allocation5], 1
    %20 = vsyncpa %s19, 0
    %21 = vsyncpa [#allocation8], 0
    %22 = vsyncpa [#allocation11], 0
    %23 = vsyncpa [#allocation6], 0
    %s24 = scalar_lea.sflag [#allocation6], 1
    %25 = vsyncpa %s24, 0
    loop: start=0, step=1, limit=4
    $region2: #{tpu_custom_call.1} parent=1 // loop_pre_header
      _
    $region3: #{tpu_custom_call.1} parent=1 // loop_header
      %s27 = sphi 0, %s31
      %p28 = scmp.ge.s32.totalorder %s27, 4
      %s37 = sphi 0, %s39
      %s40 = sphi 0, %s37
      %s41 = sphi 0, %s40
      %s57 = sphi 0, %s41
      %s63 = sphi 0, %s65
      %s66 = sphi 0, %s63
      %s67 = sphi 0, %s66
      %s83 = sphi 0, %s67
      %s87 = sphi 0, %s87
      %s89 = sphi 0, %s87
      %s90 = sphi 0, %s89
      %s104 = sphi 0, %s90
      %s108 = sphi 0, %s108
      %s110 = sphi 0, %s108
      %s111 = sphi 0, %s110
      %s125 = sphi 0, %s111
      %s129 = sphi 0, %s129
      %s131 = sphi 0, %s129
      %s132 = sphi 0, %s131
      %s146 = sphi 0, %s132
      %s150 = sphi 0, %s150
      %s152 = sphi 0, %s150
      %s153 = sphi 0, %s152
      %s167 = sphi 0, %s153
      %s171 = sphi 0, %s171
      %s173 = sphi 0, %s171
      %s174 = sphi 0, %s173
      %s188 = sphi 0, %s174
      %s192 = sphi 0, %s192
      %s194 = sphi 0, %s192
      %s195 = sphi 0, %s194
      %s209 = sphi 0, %s195
      %s213 = sphi 0, %s213
      %s215 = sphi 0, %s213
      %s216 = sphi 0, %s215
      %s230 = sphi 0, %s216
      %s234 = sphi 0, %s234
      %s236 = sphi 0, %s234
      %s237 = sphi 0, %s236
      %s251 = sphi 0, %s237
      %s255 = sphi 0, %s255
      %s257 = sphi 0, %s255
      %s258 = sphi 0, %s257
      %s272 = sphi 0, %s258
      %s276 = sphi 0, %s276
      %s278 = sphi 0, %s276
      %s279 = sphi 0, %s278
      %s293 = sphi 0, %s279
      %s297 = sphi 0, %s297
      %s299 = sphi 0, %s297
      %s300 = sphi 0, %s299
      %s314 = sphi 0, %s300
      %s320 = sphi 0, %s322
      %s323 = sphi 0, %s320
      %s324 = sphi 0, %s323
      %s340 = sphi 0, %s324
    $region4: #{tpu_custom_call.1} parent=1 // loop_header_branch
      %30 = sbr.rel (%p28) target = $region8
    $region5: #{tpu_custom_call.1} parent=1 // loop_body
      %s32 = ssub.s32 %s27, 1
      %s33 = ssub.s32 %s27, 2
      %s34 = sadd.s32 %s27, 1
      %s35 = ssub.s32 %s27, %s34
      %p36 = scmp.eq.s32.totalorder %s35, 0
      %s38 = sadd.s32 %s37, 1
      %s39 = scalar_select %p36, %s37, %s38
      %p42 = pneg %p36
      %p43 = scmp.eq.s32.totalorder %s27, 1
      %p44 = por %p42, %p43
      %p45 = scmp.ne.s32.totalorder %s37, %s40
      %p46 = scmp.eq.s32.totalorder %s27, 0
      %p47 = por %p45, %p46
      %p48 = scmp.ne.s32.totalorder %s37, %s40
      %p49 = scmp.eq.s32.totalorder %s32, 1
      %p50 = por %p48, %p49
      %p51 = scmp.ne.s32.totalorder %s40, %s41
      %p52 = scmp.eq.s32.totalorder %s32, 0
      %p53 = por %p51, %p52
      %p54 = scmp.ne.s32.totalorder %s40, %s41
      %p55 = scmp.eq.s32.totalorder %s33, 1
      %p56 = por %p54, %p55
      %p58 = scmp.ne.s32.totalorder %s41, %s57
      %p59 = scmp.eq.s32.totalorder %s33, 0
      %p60 = por %p58, %p59
      %s61 = ssub.s32 %s27, %s34
      %p62 = scmp.eq.s32.totalorder %s61, 0
      %s64 = sadd.s32 %s63, 1
      %s65 = scalar_select %p62, %s63, %s64
      %p68 = pneg %p62
      %p69 = scmp.eq.s32.totalorder %s27, 1
      %p70 = por %p68, %p69
      %p71 = scmp.ne.s32.totalorder %s63, %s66
      %p72 = scmp.eq.s32.totalorder %s27, 0
      %p73 = por %p71, %p72
      %p74 = scmp.ne.s32.totalorder %s63, %s66
      %p75 = scmp.eq.s32.totalorder %s32, 1
      %p76 = por %p74, %p75
      %p77 = scmp.ne.s32.totalorder %s66, %s67
      %p78 = scmp.eq.s32.totalorder %s32, 0
      %p79 = por %p77, %p78
      %p80 = scmp.ne.s32.totalorder %s66, %s67
      %p81 = scmp.eq.s32.totalorder %s33, 1
      %p82 = por %p80, %p81
      %p84 = scmp.ne.s32.totalorder %s67, %s83
      %p85 = scmp.eq.s32.totalorder %s33, 0
      %p86 = por %p84, %p85
      %s88 = sadd.s32 %s87, 1
      %p91 = scmp.eq.s32.totalorder %s27, 1
      %p92 = scmp.ne.s32.totalorder %s87, %s89
      %p93 = scmp.eq.s32.totalorder %s27, 0
      %p94 = por %p92, %p93
      %p95 = scmp.ne.s32.totalorder %s87, %s89
      %p96 = scmp.eq.s32.totalorder %s32, 1
      %p97 = por %p95, %p96
      %p98 = scmp.ne.s32.totalorder %s89, %s90
      %p99 = scmp.eq.s32.totalorder %s32, 0
      %p100 = por %p98, %p99
      %p101 = scmp.ne.s32.totalorder %s89, %s90
      %p102 = scmp.eq.s32.totalorder %s33, 1
      %p103 = por %p101, %p102
      %p105 = scmp.ne.s32.totalorder %s90, %s104
      %p106 = scmp.eq.s32.totalorder %s33, 0
      %p107 = por %p105, %p106
      %s109 = sadd.s32 %s108, 1
      %p112 = scmp.eq.s32.totalorder %s27, 1
      %p113 = scmp.ne.s32.totalorder %s108, %s110
      %p114 = scmp.eq.s32.totalorder %s27, 0
      %p115 = por %p113, %p114
      %p116 = scmp.ne.s32.totalorder %s108, %s110
      %p117 = scmp.eq.s32.totalorder %s32, 1
      %p118 = por %p116, %p117
      %p119 = scmp.ne.s32.totalorder %s110, %s111
      %p120 = scmp.eq.s32.totalorder %s32, 0
      %p121 = por %p119, %p120
      %p122 = scmp.ne.s32.totalorder %s110, %s111
      %p123 = scmp.eq.s32.totalorder %s33, 1
      %p124 = por %p122, %p123
      %p126 = scmp.ne.s32.totalorder %s111, %s125
      %p127 = scmp.eq.s32.totalorder %s33, 0
      %p128 = por %p126, %p127
      %s130 = sadd.s32 %s129, 1
      %p133 = scmp.eq.s32.totalorder %s27, 1
      %p134 = scmp.ne.s32.totalorder %s129, %s131
      %p135 = scmp.eq.s32.totalorder %s27, 0
      %p136 = por %p134, %p135
      %p137 = scmp.ne.s32.totalorder %s129, %s131
      %p138 = scmp.eq.s32.totalorder %s32, 1
      %p139 = por %p137, %p138
      %p140 = scmp.ne.s32.totalorder %s131, %s132
      %p141 = scmp.eq.s32.totalorder %s32, 0
      %p142 = por %p140, %p141
      %p143 = scmp.ne.s32.totalorder %s131, %s132
      %p144 = scmp.eq.s32.totalorder %s33, 1
      %p145 = por %p143, %p144
      %p147 = scmp.ne.s32.totalorder %s132, %s146
      %p148 = scmp.eq.s32.totalorder %s33, 0
      %p149 = por %p147, %p148
      %s151 = sadd.s32 %s150, 1
      %p154 = scmp.eq.s32.totalorder %s27, 1
      %p155 = scmp.ne.s32.totalorder %s150, %s152
      %p156 = scmp.eq.s32.totalorder %s27, 0
      %p157 = por %p155, %p156
      %p158 = scmp.ne.s32.totalorder %s150, %s152
      %p159 = scmp.eq.s32.totalorder %s32, 1
      %p160 = por %p158, %p159
      %p161 = scmp.ne.s32.totalorder %s152, %s153
      %p162 = scmp.eq.s32.totalorder %s32, 0
      %p163 = por %p161, %p162
      %p164 = scmp.ne.s32.totalorder %s152, %s153
      %p165 = scmp.eq.s32.totalorder %s33, 1
      %p166 = por %p164, %p165
      %p168 = scmp.ne.s32.totalorder %s153, %s167
      %p169 = scmp.eq.s32.totalorder %s33, 0
      %p170 = por %p168, %p169
      %s172 = sadd.s32 %s171, 1
      %p175 = scmp.eq.s32.totalorder %s27, 1
      %p176 = scmp.ne.s32.totalorder %s171, %s173
      %p177 = scmp.eq.s32.totalorder %s27, 0
      %p178 = por %p176, %p177
      %p179 = scmp.ne.s32.totalorder %s171, %s173
      %p180 = scmp.eq.s32.totalorder %s32, 1
      %p181 = por %p179, %p180
      %p182 = scmp.ne.s32.totalorder %s173, %s174
      %p183 = scmp.eq.s32.totalorder %s32, 0
      %p184 = por %p182, %p183
      %p185 = scmp.ne.s32.totalorder %s173, %s174
      %p186 = scmp.eq.s32.totalorder %s33, 1
      %p187 = por %p185, %p186
      %p189 = scmp.ne.s32.totalorder %s174, %s188
      %p190 = scmp.eq.s32.totalorder %s33, 0
      %p191 = por %p189, %p190
      %s193 = sadd.s32 %s192, 1
      %p196 = scmp.eq.s32.totalorder %s27, 1
      %p197 = scmp.ne.s32.totalorder %s192, %s194
      %p198 = scmp.eq.s32.totalorder %s27, 0
      %p199 = por %p197, %p198
      %p200 = scmp.ne.s32.totalorder %s192, %s194
      %p201 = scmp.eq.s32.totalorder %s32, 1
      %p202 = por %p200, %p201
      %p203 = scmp.ne.s32.totalorder %s194, %s195
      %p204 = scmp.eq.s32.totalorder %s32, 0
      %p205 = por %p203, %p204
      %p206 = scmp.ne.s32.totalorder %s194, %s195
      %p207 = scmp.eq.s32.totalorder %s33, 1
      %p208 = por %p206, %p207
      %p210 = scmp.ne.s32.totalorder %s195, %s209
      %p211 = scmp.eq.s32.totalorder %s33, 0
      %p212 = por %p210, %p211
      %s214 = sadd.s32 %s213, 1
      %p217 = scmp.eq.s32.totalorder %s27, 1
      %p218 = scmp.ne.s32.totalorder %s213, %s215
      %p219 = scmp.eq.s32.totalorder %s27, 0
      %p220 = por %p218, %p219
      %p221 = scmp.ne.s32.totalorder %s213, %s215
      %p222 = scmp.eq.s32.totalorder %s32, 1
      %p223 = por %p221, %p222
      %p224 = scmp.ne.s32.totalorder %s215, %s216
      %p225 = scmp.eq.s32.totalorder %s32, 0
      %p226 = por %p224, %p225
      %p227 = scmp.ne.s32.totalorder %s215, %s216
      %p228 = scmp.eq.s32.totalorder %s33, 1
      %p229 = por %p227, %p228
      %p231 = scmp.ne.s32.totalorder %s216, %s230
      %p232 = scmp.eq.s32.totalorder %s33, 0
      %p233 = por %p231, %p232
      %s235 = sadd.s32 %s234, 1
      %p238 = scmp.eq.s32.totalorder %s27, 1
      %p239 = scmp.ne.s32.totalorder %s234, %s236
      %p240 = scmp.eq.s32.totalorder %s27, 0
      %p241 = por %p239, %p240
      %p242 = scmp.ne.s32.totalorder %s234, %s236
      %p243 = scmp.eq.s32.totalorder %s32, 1
      %p244 = por %p242, %p243
      %p245 = scmp.ne.s32.totalorder %s236, %s237
      %p246 = scmp.eq.s32.totalorder %s32, 0
      %p247 = por %p245, %p246
      %p248 = scmp.ne.s32.totalorder %s236, %s237
      %p249 = scmp.eq.s32.totalorder %s33, 1
      %p250 = por %p248, %p249
      %p252 = scmp.ne.s32.totalorder %s237, %s251
      %p253 = scmp.eq.s32.totalorder %s33, 0
      %p254 = por %p252, %p253
      %s256 = sadd.s32 %s255, 1
      %p259 = scmp.eq.s32.totalorder %s27, 1
      %p260 = scmp.ne.s32.totalorder %s255, %s257
      %p261 = scmp.eq.s32.totalorder %s27, 0
      %p262 = por %p260, %p261
      %p263 = scmp.ne.s32.totalorder %s255, %s257
      %p264 = scmp.eq.s32.totalorder %s32, 1
      %p265 = por %p263, %p264
      %p266 = scmp.ne.s32.totalorder %s257, %s258
      %p267 = scmp.eq.s32.totalorder %s32, 0
      %p268 = por %p266, %p267
      %p269 = scmp.ne.s32.totalorder %s257, %s258
      %p270 = scmp.eq.s32.totalorder %s33, 1
      %p271 = por %p269, %p270
      %p273 = scmp.ne.s32.totalorder %s258, %s272
      %p274 = scmp.eq.s32.totalorder %s33, 0
      %p275 = por %p273, %p274
      %s277 = sadd.s32 %s276, 1
      %p280 = scmp.eq.s32.totalorder %s27, 1
      %p281 = scmp.ne.s32.totalorder %s276, %s278
      %p282 = scmp.eq.s32.totalorder %s27, 0
      %p283 = por %p281, %p282
      %p284 = scmp.ne.s32.totalorder %s276, %s278
      %p285 = scmp.eq.s32.totalorder %s32, 1
      %p286 = por %p284, %p285
      %p287 = scmp.ne.s32.totalorder %s278, %s279
      %p288 = scmp.eq.s32.totalorder %s32, 0
      %p289 = por %p287, %p288
      %p290 = scmp.ne.s32.totalorder %s278, %s279
      %p291 = scmp.eq.s32.totalorder %s33, 1
      %p292 = por %p290, %p291
      %p294 = scmp.ne.s32.totalorder %s279, %s293
      %p295 = scmp.eq.s32.totalorder %s33, 0
      %p296 = por %p294, %p295
      %s298 = sadd.s32 %s297, 1
      %p301 = scmp.eq.s32.totalorder %s27, 1
      %p302 = scmp.ne.s32.totalorder %s297, %s299
      %p303 = scmp.eq.s32.totalorder %s27, 0
      %p304 = por %p302, %p303
      %p305 = scmp.ne.s32.totalorder %s297, %s299
      %p306 = scmp.eq.s32.totalorder %s32, 1
      %p307 = por %p305, %p306
      %p308 = scmp.ne.s32.totalorder %s299, %s300
      %p309 = scmp.eq.s32.totalorder %s32, 0
      %p310 = por %p308, %p309
      %p311 = scmp.ne.s32.totalorder %s299, %s300
      %p312 = scmp.eq.s32.totalorder %s33, 1
      %p313 = por %p311, %p312
      %p315 = scmp.ne.s32.totalorder %s300, %s314
      %p316 = scmp.eq.s32.totalorder %s33, 0
      %p317 = por %p315, %p316
      %s318 = ssub.s32 %s27, %s34
      %p319 = scmp.eq.s32.totalorder %s318, 0
      %s321 = sadd.s32 %s320, 1
      %s322 = scalar_select %p319, %s320, %s321
      %p325 = pneg %p319
      %p326 = scmp.eq.s32.totalorder %s27, 1
      %p327 = por %p325, %p326
      %p328 = scmp.ne.s32.totalorder %s320, %s323
      %p329 = scmp.eq.s32.totalorder %s27, 0
      %p330 = por %p328, %p329
      %p331 = scmp.ne.s32.totalorder %s320, %s323
      %p332 = scmp.eq.s32.totalorder %s32, 1
      %p333 = por %p331, %p332
      %p334 = scmp.ne.s32.totalorder %s323, %s324
      %p335 = scmp.eq.s32.totalorder %s32, 0
      %p336 = por %p334, %p335
      %p337 = scmp.ne.s32.totalorder %s323, %s324
      %p338 = scmp.eq.s32.totalorder %s33, 1
      %p339 = por %p337, %p338
      %p341 = scmp.ne.s32.totalorder %s324, %s340
      %p342 = scmp.eq.s32.totalorder %s33, 0
      %p343 = por %p341, %p342
      %p344 = scmp.le.s32.totalorder 1, %s27
      %p345 = scmp.lt.s32.totalorder %s27, 3
      %p346 = pnand %p344, %p345
      %p347 = pneg %p346
      // Predicated region
      $region9: #{tpu_custom_call.1} parent=5 // pred_check
        _
      $region10: #{tpu_custom_call.1} parent=5 // pred_check_branch
        %349 = sbr.rel (%p346) target = $region12
      $region11: #{tpu_custom_call.1} parent=5 // pred_region
        %s350 = ssub.s32 %s27, 1
        // Predicated region
        $region13: #{tpu_custom_call.1} parent=11 // pred_check
          %p351 = pneg %p100
        $region14: #{tpu_custom_call.1} parent=11 // pred_check_branch
          %353 = sbr.rel (%p351) target = $region16
        $region15: #{tpu_custom_call.1} parent=11 // pred_region
          _
        $region16: #{tpu_custom_call.1} parent=11 // pred_fallthru
          _
        // Predicated region
        $region17: #{tpu_custom_call.1} parent=11 // pred_check
          %p354 = pneg %p121
        $region18: #{tpu_custom_call.1} parent=11 // pred_check_branch
          %356 = sbr.rel (%p354) target = $region20
        $region19: #{tpu_custom_call.1} parent=11 // pred_region
          _
        $region20: #{tpu_custom_call.1} parent=11 // pred_fallthru
          _
        // Predicated region
        $region21: #{tpu_custom_call.1} parent=11 // pred_check
          %p357 = pneg %p142
        $region22: #{tpu_custom_call.1} parent=11 // pred_check_branch
          %359 = sbr.rel (%p357) target = $region24
        $region23: #{tpu_custom_call.1} parent=11 // pred_region
          %s361 = ssub.s32 3072, 3072
          %362 = vsyncadd [#allocation8], %s361
          %s363 = sshll.u32 [#allocation7], 4
          %s364 = int_to_ptr.vmem [resolvable:$true] %s363
          %369 = dma.hbm_to_vmem [thread:$0]  %s4, 3072, %s364, [#allocation8], 192, 192, 12
        $region24: #{tpu_custom_call.1} parent=11 // pred_fallthru
          _
        // Predicated region
        $region25: #{tpu_custom_call.1} parent=11 // pred_check
          %p370 = pneg %p163
        $region26: #{tpu_custom_call.1} parent=11 // pred_check_branch
          %372 = sbr.rel (%p370) target = $region28
        $region27: #{tpu_custom_call.1} parent=11 // pred_region
          %s374 = ssub.s32 1024, 1024
          %375 = vsyncadd [#allocation8], %s374
          %s376 = sshll.u32 [#allocation9], 4
          %s377 = int_to_ptr.vmem [resolvable:$true] %s376
          %382 = dma.hbm_to_vmem [thread:$0]  %s5, 1024, %s377, [#allocation8], 64, 64, 4
        $region28: #{tpu_custom_call.1} parent=11 // pred_fallthru
          _
        // Predicated region
        $region29: #{tpu_custom_call.1} parent=11 // pred_check
          %p383 = pneg %p184
        $region30: #{tpu_custom_call.1} parent=11 // pred_check_branch
          %385 = sbr.rel (%p383) target = $region32
        $region31: #{tpu_custom_call.1} parent=11 // pred_region
          _
        $region32: #{tpu_custom_call.1} parent=11 // pred_fallthru
          _
        // Predicated region
        $region33: #{tpu_custom_call.1} parent=11 // pred_check
          %p386 = pneg %p205
        $region34: #{tpu_custom_call.1} parent=11 // pred_check_branch
          %388 = sbr.rel (%p386) target = $region36
        $region35: #{tpu_custom_call.1} parent=11 // pred_region
          _
        $region36: #{tpu_custom_call.1} parent=11 // pred_fallthru
          _
        // Predicated region
        $region37: #{tpu_custom_call.1} parent=11 // pred_check
          %p389 = pneg %p226
        $region38: #{tpu_custom_call.1} parent=11 // pred_check_branch
          %391 = sbr.rel (%p389) target = $region40
        $region39: #{tpu_custom_call.1} parent=11 // pred_region
          _
        $region40: #{tpu_custom_call.1} parent=11 // pred_fallthru
          _
        // Predicated region
        $region41: #{tpu_custom_call.1} parent=11 // pred_check
          %p392 = pneg %p247
        $region42: #{tpu_custom_call.1} parent=11 // pred_check_branch
          %394 = sbr.rel (%p392) target = $region44
        $region43: #{tpu_custom_call.1} parent=11 // pred_region
          %s396 = ssub.s32 2048, 2048
          %397 = vsyncadd [#allocation11], %s396
          %s398 = sshll.u32 [#allocation10], 4
          %s399 = int_to_ptr.vmem [resolvable:$true] %s398
          %404 = dma.hbm_to_vmem [thread:$0]  %s9, 2048, %s399, [#allocation11], 128, 128, 8
        $region44: #{tpu_custom_call.1} parent=11 // pred_fallthru
          _
        // Predicated region
        $region45: #{tpu_custom_call.1} parent=11 // pred_check
          %p405 = pneg %p268
        $region46: #{tpu_custom_call.1} parent=11 // pred_check_branch
          %407 = sbr.rel (%p405) target = $region48
        $region47: #{tpu_custom_call.1} parent=11 // pred_region
          _
        $region48: #{tpu_custom_call.1} parent=11 // pred_fallthru
          _
        // Predicated region
        $region49: #{tpu_custom_call.1} parent=11 // pred_check
          %p408 = pneg %p289
        $region50: #{tpu_custom_call.1} parent=11 // pred_check_branch
          %410 = sbr.rel (%p408) target = $region52
        $region51: #{tpu_custom_call.1} parent=11 // pred_region
          %s412 = ssub.s32 2048, 2048
          %413 = vsyncadd [#allocation11], %s412
          %s414 = sshll.u32 [#allocation12], 4
          %s415 = int_to_ptr.vmem [resolvable:$true] %s414
          %420 = dma.hbm_to_vmem [thread:$0]  %s11, 2048, %s415, [#allocation11], 64, 64, 4
        $region52: #{tpu_custom_call.1} parent=11 // pred_fallthru
          _
        // Predicated region
        $region53: #{tpu_custom_call.1} parent=11 // pred_check
          %p421 = pneg %p310
        $region54: #{tpu_custom_call.1} parent=11 // pred_check_branch
          %423 = sbr.rel (%p421) target = $region56
        $region55: #{tpu_custom_call.1} parent=11 // pred_region
          _
        $region56: #{tpu_custom_call.1} parent=11 // pred_fallthru
          _
      $region12: #{tpu_custom_call.1} parent=5 // pred_fallthru
        _
      %p424 = scmp.lt.s32.totalorder %s27, 2
      // Predicated region
      $region57: #{tpu_custom_call.1} parent=5 // pred_check
        %p425 = pneg %p424
      $region58: #{tpu_custom_call.1} parent=5 // pred_check_branch
        %427 = sbr.rel (%p425) target = $region60
      $region59: #{tpu_custom_call.1} parent=5 // pred_region
        // Predicated region
        $region61: #{tpu_custom_call.1} parent=59 // pred_check
          %p428 = pneg %p47
        $region62: #{tpu_custom_call.1} parent=59 // pred_check_branch
          %430 = sbr.rel (%p428) target = $region64
        $region63: #{tpu_custom_call.1} parent=59 // pred_region
          %s431 = sand.u32 %s37, 1
          %s432 = scalar_lea.sflag [#allocation5], %s431
          %s433 = sand.u32 %s37, 1
          %s434 = smul.addr %s433, 8
          %s435 = scalar_lea.vmem [#allocation4], %s434
          %s437 = ssub.s32 128, 128
          %438 = vsyncadd %s432, %s437
          %s439 = smul.addr %s27, 128
          %s440 = scalar_lea.hbm %s0, %s439
          %s442 = sshll.u32 %s435, 4
          %s443 = int_to_ptr.vmem [resolvable:$true] %s442
          %445 = dma.hbm_to_vmem [thread:$0]  %s440, 128, %s443, %s432
        $region64: #{tpu_custom_call.1} parent=59 // pred_fallthru
          _
        // Predicated region
        $region65: #{tpu_custom_call.1} parent=59 // pred_check
          %p446 = pneg %p73
        $region66: #{tpu_custom_call.1} parent=59 // pred_check_branch
          %448 = sbr.rel (%p446) target = $region68
        $region67: #{tpu_custom_call.1} parent=59 // pred_region
          %p449 = scmp.lt.s32.totalorder %s27, 1
          %s450 = scalar_select %p449, %s27, 1
          %s451 = scalar_lea.vmem %s1, %s450
        $region68: #{tpu_custom_call.1} parent=59 // pred_fallthru
          _
      $region60: #{tpu_custom_call.1} parent=5 // pred_fallthru
        _
      %p452 = scmp.le.s32.totalorder 1, %s27
      %p453 = scmp.lt.s32.totalorder %s27, 3
      %p454 = pnand %p452, %p453
      %p455 = pneg %p454
      // Predicated region
      $region69: #{tpu_custom_call.1} parent=5 // pred_check
        _
      $region70: #{tpu_custom_call.1} parent=5 // pred_check_branch
        %457 = sbr.rel (%p454) target = $region72
      $region71: #{tpu_custom_call.1} parent=5 // pred_region
        %s458 = ssub.s32 %s27, 1
        %s459 = sand.u32 %s40, 1
        %s460 = scalar_lea.sflag [#allocation5], %s459
        %s461 = sand.u32 %s40, 1
        %s462 = smul.addr %s461, 8
        %s463 = scalar_lea.vmem [#allocation4], %s462
        // Predicated region
        $region73: #{tpu_custom_call.1} parent=71 // pred_check
          %p464 = pneg %p53
        $region74: #{tpu_custom_call.1} parent=71 // pred_check_branch
          %466 = sbr.rel (%p464) target = $region76
        $region75: #{tpu_custom_call.1} parent=71 // pred_region
          %467 = dma.done %s460, 128
        $region76: #{tpu_custom_call.1} parent=71 // pred_fallthru
          _
        // Predicated region
        $region77: #{tpu_custom_call.1} parent=71 // pred_check
          %p468 = pneg %p142
        $region78: #{tpu_custom_call.1} parent=71 // pred_check_branch
          %470 = sbr.rel (%p468) target = $region80
        $region79: #{tpu_custom_call.1} parent=71 // pred_region
          %471 = dma.done [#allocation8], 3072
        $region80: #{tpu_custom_call.1} parent=71 // pred_fallthru
          _
        // Predicated region
        $region81: #{tpu_custom_call.1} parent=71 // pred_check
          %p472 = pneg %p163
        $region82: #{tpu_custom_call.1} parent=71 // pred_check_branch
          %474 = sbr.rel (%p472) target = $region84
        $region83: #{tpu_custom_call.1} parent=71 // pred_region
          %475 = dma.done [#allocation8], 1024
        $region84: #{tpu_custom_call.1} parent=71 // pred_fallthru
          _
        // Predicated region
        $region85: #{tpu_custom_call.1} parent=71 // pred_check
          %p476 = pneg %p247
        $region86: #{tpu_custom_call.1} parent=71 // pred_check_branch
          %478 = sbr.rel (%p476) target = $region88
        $region87: #{tpu_custom_call.1} parent=71 // pred_region
          %479 = dma.done [#allocation11], 2048
        $region88: #{tpu_custom_call.1} parent=71 // pred_fallthru
          _
        // Predicated region
        $region89: #{tpu_custom_call.1} parent=71 // pred_check
          %p480 = pneg %p289
        $region90: #{tpu_custom_call.1} parent=71 // pred_check_branch
          %482 = sbr.rel (%p480) target = $region92
        $region91: #{tpu_custom_call.1} parent=71 // pred_region
          %483 = dma.done [#allocation11], 2048
        $region92: #{tpu_custom_call.1} parent=71 // pred_fallthru
          _
        %s484 = sand.u32 %s40, 1
        %s485 = scalar_lea.sflag [#allocation5], %s484
        %s486 = sand.u32 %s40, 1
        %s487 = smul.addr %s486, 8
        %s488 = scalar_lea.vmem [#allocation4], %s487
        %p489 = pneg %p53
        %p490 = pneg %p50
        %p491 = scmp.lt.s32.totalorder %s32, 1
        %s492 = scalar_select %p491, %s32, 1
        %s493 = scalar_lea.vmem %s1, %s492
        %p494 = pneg %p79
        %p495 = pneg %p76
        %p496 = pneg %p100
        %p497 = pneg %p97
        %p498 = pneg %p121
        %p499 = pneg %p118
        %p500 = pneg %p142
        %p501 = pneg %p139
        %p502 = pneg %p163
        %p503 = pneg %p160
        %p504 = pneg %p184
        %p505 = pneg %p181
        %p506 = pneg %p205
        %p507 = pneg %p202
        %p508 = pneg %p226
        %p509 = pneg %p223
        %p510 = pneg %p247
        %p511 = pneg %p244
        %p512 = pneg %p268
        %p513 = pneg %p265
        %p514 = pneg %p289
        %p515 = pneg %p286
        %p516 = pneg %p310
        %p517 = pneg %p307
        %p518 = pneg %p336
        %p519 = pneg %p333
        %s520 = sand.u32 %s323, 1
        %s521 = scalar_lea.sflag [#allocation6], %s520
        %s522 = sand.u32 %s323, 1
        %s523 = smul.addr %s522, 8
        %s524 = scalar_lea.vmem [#allocation13], %s523
        %p525 = scmp.lt.s32.totalorder %s32, 1
        %s526 = scalar_select %p525, %s32, 1
        %s527 = scalar_lea.vmem %s1, %s526
        %v529 = vld [vmem:[%s463] sm:$0xff]
        %530 = vst [vmem:[#allocation2] sm:$0xff] %v529
        %v531 = vld [vmem:[%s527] sm:$0x1]
        %532 = vst [vmem:[#allocation2 + $0x8] sm:$0x1] %v531
        %533 = vst [vmem:[#allocation2 + $0x9] sm:$0x7f] 0.0
        %v534 = vld [vmem:[#allocation2] sm:$0xff]
        %v535 = vld [vmem:[#allocation2 + $0x8] sm:$0xff]
        %v536 = vld [vmem:[%s2] sm:$0x1]
        %v537 = vld [vmem:[%s3] sm:$0x1]
        %538 = vadd.xlane.f32.xlu0 %v534
        %v539 = vpop.xlane.xlu0 %538
        %540 = vadd.xlane.f32.xlu0 %v535
        %v541 = vpop.xlane.xlu0 %540
        %v542 = vrcp.pop 128.0
        %v543 = vmul.f32 %v539, %v542
        %v544 = vmul.f32 %v541, %v542
        %v545 = vsub.f32 %v534, %v543
        %v546 = vsub.f32 %v535, %v544
        %v547 = vmul.f32 %v545, %v545
        %v548 = vmul.f32 %v546, %v546
        %549 = vadd.xlane.f32.xlu0 %v547
        %v550 = vpop.xlane.xlu0 %549
        %551 = vadd.xlane.f32.xlu0 %v548
        %v552 = vpop.xlane.xlu0 %551
        %v553 = vmul.f32 %v550, %v542
        %v554 = vmul.f32 %v552, %v542
        %v555 = vadd.f32 %v553, 1e-05
        %v556 = vadd.f32 %v554, 1e-05
        %v557 = vrsqrt.pop %v555
        %v558 = vrsqrt.pop %v556
        %v559 = vmul.f32 %v545, %v557
        %v560 = vmul.f32 %v546, %v558
        %v562 = vlaneseq
        %v563 = vshrl.u32 %v562, 7
        %v564 = vsub.s32 0, %v563
        %v565 = vrot.slane %v536, %v564
        %v567 = vmul.f32 %v559, %v565
        %v568 = vmul.f32 %v560, %v565
        %v570 = vlaneseq
        %v571 = vshrl.u32 %v570, 7
        %v572 = vsub.s32 0, %v571
        %v573 = vrot.slane %v537, %v572
        %v575 = vadd.f32 %v567, %v573
        %v576 = vadd.f32 %v568, %v573
        %v577 = vpack.c.bf16 %v576, %v575
        %v578 = vld [vmem:[#allocation7] sm:$0xff]
        %v579 = vld [vmem:[#allocation7 + $0x8] sm:$0xf]
        %v580 = vld [vmem:[#allocation7 + $0xc] sm:$0xff]
        %v581 = vld [vmem:[#allocation7 + $0x14] sm:$0xf]
        %v582 = vld [vmem:[#allocation7 + $0x18] sm:$0xff]
        %v583 = vld [vmem:[#allocation7 + $0x20] sm:$0xf]
        %v584 = vld [vmem:[#allocation7 + $0x24] sm:$0xff]
        %v585 = vld [vmem:[#allocation7 + $0x2c] sm:$0xf]
        %v586 = vld [vmem:[#allocation7 + $0x30] sm:$0xff]
        %v587 = vld [vmem:[#allocation7 + $0x38] sm:$0xf]
        %v588 = vld [vmem:[#allocation7 + $0x3c] sm:$0xff]
        %v589 = vld [vmem:[#allocation7 + $0x44] sm:$0xf]
        %v590 = vld [vmem:[#allocation7 + $0x48] sm:$0xff]
        %v591 = vld [vmem:[#allocation7 + $0x50] sm:$0xf]
        %v592 = vld [vmem:[#allocation7 + $0x54] sm:$0xff]
        %v593 = vld [vmem:[#allocation7 + $0x5c] sm:$0xf]
        %v594 = vld [vmem:[#allocation7 + $0x60] sm:$0xff]
        %v595 = vld [vmem:[#allocation7 + $0x68] sm:$0xf]
        %v596 = vld [vmem:[#allocation7 + $0x6c] sm:$0xff]
        %v597 = vld [vmem:[#allocation7 + $0x74] sm:$0xf]
        %v598 = vld [vmem:[#allocation7 + $0x78] sm:$0xff]
        %v599 = vld [vmem:[#allocation7 + $0x80] sm:$0xf]
        %v600 = vld [vmem:[#allocation7 + $0x84] sm:$0xff]
        %v601 = vld [vmem:[#allocation7 + $0x8c] sm:$0xf]
        %v602 = vld [vmem:[#allocation7 + $0x90] sm:$0xff]
        %v603 = vld [vmem:[#allocation7 + $0x98] sm:$0xf]
        %v604 = vld [vmem:[#allocation7 + $0x9c] sm:$0xff]
        %v605 = vld [vmem:[#allocation7 + $0xa4] sm:$0xf]
        %v606 = vld [vmem:[#allocation7 + $0xa8] sm:$0xff]
        %v607 = vld [vmem:[#allocation7 + $0xb0] sm:$0xf]
        %v608 = vld [vmem:[#allocation7 + $0xb4] sm:$0xff]
        %v609 = vld [vmem:[#allocation7 + $0xbc] sm:$0xf]
        %v642 = vunpack.c.l.b16 %v578
        %v643 = vunpack.c.h.b16 %v578
        %v644 = vunpack.c.l.b16 %v579
        %v645 = vunpack.c.l.b16 %v580
        %v646 = vunpack.c.h.b16 %v580
        %v647 = vunpack.c.l.b16 %v581
        %v648 = vunpack.c.l.b16 %v582
        %v649 = vunpack.c.h.b16 %v582
        %v650 = vunpack.c.l.b16 %v583
        %v651 = vunpack.c.l.b16 %v584
        %v652 = vunpack.c.h.b16 %v584
        %v653 = vunpack.c.l.b16 %v585
        %v654 = vunpack.c.l.b16 %v586
        %v655 = vunpack.c.h.b16 %v586
        %v656 = vunpack.c.l.b16 %v587
        %v657 = vunpack.c.l.b16 %v588
        %v658 = vunpack.c.h.b16 %v588
        %v659 = vunpack.c.l.b16 %v589
        %v660 = vunpack.c.l.b16 %v590
        %v661 = vunpack.c.h.b16 %v590
        %v662 = vunpack.c.l.b16 %v591
        %v663 = vunpack.c.l.b16 %v592
        %v664 = vunpack.c.h.b16 %v592
        %v665 = vunpack.c.l.b16 %v593
        %v666 = vunpack.c.l.b16 %v594
        %v667 = vunpack.c.h.b16 %v594
        %v668 = vunpack.c.l.b16 %v595
        %v669 = vunpack.c.l.b16 %v596
        %v670 = vunpack.c.h.b16 %v596
        %v671 = vunpack.c.l.b16 %v597
        %v672 = vunpack.c.l.b16 %v598
        %v673 = vunpack.c.h.b16 %v598
        %v674 = vunpack.c.l.b16 %v599
        %v675 = vunpack.c.l.b16 %v600
        %v676 = vunpack.c.h.b16 %v600
        %v677 = vunpack.c.l.b16 %v601
        %v678 = vunpack.c.l.b16 %v602
        %v679 = vunpack.c.h.b16 %v602
        %v680 = vunpack.c.l.b16 %v603
        %v681 = vunpack.c.l.b16 %v604
        %v682 = vunpack.c.h.b16 %v604
        %v683 = vunpack.c.l.b16 %v605
        %v684 = vunpack.c.l.b16 %v606
        %v685 = vunpack.c.h.b16 %v606
        %v686 = vunpack.c.l.b16 %v607
        %v687 = vunpack.c.l.b16 %v608
        %v688 = vunpack.c.h.b16 %v608
        %v689 = vunpack.c.l.b16 %v609
        %v690 = vpack.c.b16 %v645, %v642
        %v691 = vpack.c.b16 %v646, %v643
        %v692 = vpack.c.b16 %v647, %v644
        %v693 = vpack.c.b16 %v651, %v648
        %v694 = vpack.c.b16 %v652, %v649
        %v695 = vpack.c.b16 %v653, %v650
        %v696 = vpack.c.b16 %v657, %v654
        %v697 = vpack.c.b16 %v658, %v655
        %v698 = vpack.c.b16 %v659, %v656
        %v699 = vpack.c.b16 %v663, %v660
        %v700 = vpack.c.b16 %v664, %v661
        %v701 = vpack.c.b16 %v665, %v662
        %v702 = vpack.c.b16 %v669, %v666
        %v703 = vpack.c.b16 %v670, %v667
        %v704 = vpack.c.b16 %v671, %v668
        %v705 = vpack.c.b16 %v675, %v672
        %v706 = vpack.c.b16 %v676, %v673
        %v707 = vpack.c.b16 %v677, %v674
        %v708 = vpack.c.b16 %v681, %v678
        %v709 = vpack.c.b16 %v682, %v679
        %v710 = vpack.c.b16 %v683, %v680
        %v711 = vpack.c.b16 %v687, %v684
        %v712 = vpack.c.b16 %v688, %v685
        %v713 = vpack.c.b16 %v689, %v686
        %738 = vmatprep.subr.bf16.mxu0 %v691
        %739 = vmatpush1.bf16.msra.mxu0 %v690
        %740 = vmatprep.subr.bf16.mxu0 %v694
        %741 = vmatpush1.bf16.msra.mxu0 %v693
        %742 = vmatprep.subr.bf16.mxu0 %v697
        %743 = vmatpush1.bf16.msra.mxu0 %v696
        %744 = vmatprep.subr.bf16.mxu0 %v700
        %745 = vmatpush1.bf16.msra.mxu0 %v699
        %746 = vmatprep.subr.bf16.mxu0 %v703
        %747 = vmatpush1.bf16.msra.mxu0 %v702
        %748 = vmatprep.subr.bf16.mxu0 %v706
        %749 = vmatpush1.bf16.msra.mxu0 %v705
        %750 = vmatprep.subr.bf16.mxu0 %v709
        %751 = vmatpush1.bf16.msra.mxu0 %v708
        %752 = vmatprep.subr.bf16.mxu0 %v712
        %753 = vmatpush1.bf16.msra.mxu0 %v711
        %754 = vmatprep.subr.bf16.mxu0 0
        %755 = vmatpush1.bf16.msra.mxu0 0
        %756 = vmatprep.subr.bf16.mxu0 0
        %757 = vmatpush1.bf16.msra.mxu0 0
        %758 = vmatprep.subr.bf16.mxu0 0
        %759 = vmatpush1.bf16.msra.mxu0 0
        %760 = vmatprep.subr.bf16.mxu0 0
        %761 = vmatpush1.bf16.msra.mxu0 0
        %762 = vmatprep.subr.bf16.mxu0 0
        %763 = vmatpush1.bf16.msra.mxu0 0
        %764 = vmatprep.subr.bf16.mxu0 0
        %765 = vmatpush1.bf16.msra.mxu0 0
        %766 = vmatprep.subr.bf16.mxu0 0
        %767 = vmatpush1.bf16.msra.mxu0 0
        %768 = vmatprep.subr.bf16.mxu0 0
        %769 = vmatpush1.bf16.msra.mxu0 0
        %770 = vmatprep.mubr.bf16.mxu0 0
        %771 = vmatmul.mubr.bf16.gmra.mrb[0].mxu0 %v577
        %v772 = vpop.f32.mrb[0].mxu0
        %v773 = vadd.f32 0.0, %v772
        %v774 = vpop.f32.mrb[0].mxu0
        %v775 = vadd.f32 0.0, %v774
        %v776 = vpop.f32.mrb[0].mxu0
        %v777 = vpop.f32.mrb[0].mxu0
        %v778 = vadd.f32 0.0, %v777
        %779 = vdwg.mxu0
        %780 = vmatprep.subr.bf16.mxu0 0
        %781 = vmatpush1.bf16.msra.mxu0 %v692
        %782 = vmatprep.subr.bf16.mxu0 0
        %783 = vmatpush1.bf16.msra.mxu0 %v695
        %784 = vmatprep.subr.bf16.mxu0 0
        %785 = vmatpush1.bf16.msra.mxu0 %v698
        %786 = vmatprep.subr.bf16.mxu0 0
        %787 = vmatpush1.bf16.msra.mxu0 %v701
        %788 = vmatprep.subr.bf16.mxu0 0
        %789 = vmatpush1.bf16.msra.mxu0 %v704
        %790 = vmatprep.subr.bf16.mxu0 0
        %791 = vmatpush1.bf16.msra.mxu0 %v707
        %792 = vmatprep.subr.bf16.mxu0 0
        %793 = vmatpush1.bf16.msra.mxu0 %v710
        %794 = vmatprep.subr.bf16.mxu0 0
        %795 = vmatpush1.bf16.msra.mxu0 %v713
        %796 = vmatprep.subr.bf16.mxu0 0
        %797 = vmatpush1.bf16.msra.mxu0 0
        %798 = vmatprep.subr.bf16.mxu0 0
        %799 = vmatpush1.bf16.msra.mxu0 0
        %800 = vmatprep.subr.bf16.mxu0 0
        %801 = vmatpush1.bf16.msra.mxu0 0
        %802 = vmatprep.subr.bf16.mxu0 0
        %803 = vmatpush1.bf16.msra.mxu0 0
        %804 = vmatprep.subr.bf16.mxu0 0
        %805 = vmatpush1.bf16.msra.mxu0 0
        %806 = vmatprep.subr.bf16.mxu0 0
        %807 = vmatpush1.bf16.msra.mxu0 0
        %808 = vmatprep.subr.bf16.mxu0 0
        %809 = vmatpush1.bf16.msra.mxu0 0
        %810 = vmatprep.subr.bf16.mxu0 0
        %811 = vmatpush1.bf16.msra.mxu0 0
        %812 = vmatprep.mubr.bf16.mxu0 0
        %813 = vmatmul.mubr.bf16.gmra.mrb[0].mxu0 %v577
        %v814 = vpop.f32.mrb[0].mxu0
        %v815 = vadd.f32 0.0, %v814
        %v816 = vpop.f32.mrb[0].mxu0
        %v817 = vpop.f32.mrb[0].mxu0
        %v818 = vadd.f32 0.0, %v817
        %v819 = vpop.f32.mrb[0].mxu0
        %820 = vdwg.mxu0
        %v821 = vlaneseq
        %v822 = vand.u32 %v821, 127
        %vm823 = vcmp.lt.s32.totalorder %v822, 8
        %vm824 = vcmp.eq.s32.totalorder %v822, 8
        %vm825 = vmor %vm823, %vm824
        %v826 = vsel %vm825, 0.0, -1e+30
        %v827 = vpack.c.bf16 %v773, %v773
        %v828 = vpack.c.bf16 %v778, %v775
        %v829 = vpack.c.bf16 %v818, %v815
        %vm830 = vcmask 261120
        %v832 = vsel %vm830, %v827, 0
        %v835 = vsel %vm830, %v828, 0
        %837 = vmatprep.subr.bf16.mxu0 0
        %838 = vmatpush1.bf16.xpose.msra.mxu0 %v835
        %839 = vmatprep.subr.bf16.mxu0 0
        %840 = vmatpush1.bf16.xpose.msra.mxu0 0
        %841 = vmatprep.subr.bf16.mxu0 0
        %842 = vmatpush1.bf16.xpose.msra.mxu0 0
        %843 = vmatprep.subr.bf16.mxu0 0
        %844 = vmatpush1.bf16.xpose.msra.mxu0 0
        %845 = vmatprep.subr.bf16.mxu0 0
        %846 = vmatpush1.bf16.xpose.msra.mxu0 0
        %847 = vmatprep.subr.bf16.mxu0 0
        %848 = vmatpush1.bf16.xpose.msra.mxu0 0
        %849 = vmatprep.subr.bf16.mxu0 0
        %850 = vmatpush1.bf16.xpose.msra.mxu0 0
        %851 = vmatprep.subr.bf16.mxu0 0
        %852 = vmatpush1.bf16.xpose.msra.mxu0 0
        %853 = vmatprep.subr.bf16.mxu0 0
        %854 = vmatpush1.bf16.xpose.msra.mxu0 0
        %855 = vmatprep.subr.bf16.mxu0 0
        %856 = vmatpush1.bf16.xpose.msra.mxu0 0
        %857 = vmatprep.subr.bf16.mxu0 0
        %858 = vmatpush1.bf16.xpose.msra.mxu0 0
        %859 = vmatprep.subr.bf16.mxu0 0
        %860 = vmatpush1.bf16.xpose.msra.mxu0 0
        %861 = vmatprep.subr.bf16.mxu0 0
        %862 = vmatpush1.bf16.xpose.msra.mxu0 0
        %863 = vmatprep.subr.bf16.mxu0 0
        %864 = vmatpush1.bf16.xpose.msra.mxu0 0
        %865 = vmatprep.subr.bf16.mxu0 0
        %866 = vmatpush1.bf16.xpose.msra.mxu0 0
        %867 = vmatprep.subr.bf16.mxu0 0
        %868 = vmatpush1.bf16.xpose.msra.mxu0 0
        %869 = vmatprep.mubr.bf16.mxu0 0
        %870 = vmatmul.mubr.bf16.gmra.mrb[0].mxu0 %v832
        %v871 = vpop.f32.mrb[0].mxu0
        %v872 = vadd.f32 %v826, %v871
        %v873 = vpop.f32.mrb[0].mxu0
        %v874 = vpop.f32.mrb[0].mxu0
        %v875 = vpop.f32.mrb[0].mxu0
        %876 = vdwg.mxu0
        %vm877 = vcmask 130048
        %v878 = vsel %vm877, %v872, -inf
        %879 = vmax.xlane.f32.xlu0 %v878
        %v880 = vpop.xlane.xlu0 %879
        %v881 = vsub.f32 %v872, %v880
        %v882 = vmul.f32 %v881, 1.442695
        %v883 = vpow.pop %v882
        %v884 = vsel %vm877, %v883, 0.0
        %885 = vadd.xlane.f32.xlu0 %v884
        %v886 = vpop.xlane.xlu0 %885
        %v887 = vrcp.pop %v886
        %v888 = vmul.f32 %v883, %v887
        %v889 = vpack.c.bf16 %v888, %v888
        %v891 = vsel %vm877, %v889, 0
        %893 = vmatprep.subr.bf16.mxu0 0
        %894 = vmatpush1.bf16.msra.mxu0 %v829
        %895 = vmatprep.subr.bf16.mxu0 0
        %896 = vmatpush1.bf16.msra.mxu0 0
        %897 = vmatprep.subr.bf16.mxu0 0
        %898 = vmatpush1.bf16.msra.mxu0 0
        %899 = vmatprep.subr.bf16.mxu0 0
        %900 = vmatpush1.bf16.msra.mxu0 0
        %901 = vmatprep.subr.bf16.mxu0 0
        %902 = vmatpush1.bf16.msra.mxu0 0
        %903 = vmatprep.subr.bf16.mxu0 0
        %904 = vmatpush1.bf16.msra.mxu0 0
        %905 = vmatprep.subr.bf16.mxu0 0
        %906 = vmatpush1.bf16.msra.mxu0 0
        %907 = vmatprep.subr.bf16.mxu0 0
        %908 = vmatpush1.bf16.msra.mxu0 0
        %909 = vmatprep.subr.bf16.mxu0 0
        %910 = vmatpush1.bf16.msra.mxu0 0
        %911 = vmatprep.subr.bf16.mxu0 0
        %912 = vmatpush1.bf16.msra.mxu0 0
        %913 = vmatprep.subr.bf16.mxu0 0
        %914 = vmatpush1.bf16.msra.mxu0 0
        %915 = vmatprep.subr.bf16.mxu0 0
        %916 = vmatpush1.bf16.msra.mxu0 0
        %917 = vmatprep.subr.bf16.mxu0 0
        %918 = vmatpush1.bf16.msra.mxu0 0
        %919 = vmatprep.subr.bf16.mxu0 0
        %920 = vmatpush1.bf16.msra.mxu0 0
        %921 = vmatprep.subr.bf16.mxu0 0
        %922 = vmatpush1.bf16.msra.mxu0 0
        %923 = vmatprep.subr.bf16.mxu0 0
        %924 = vmatpush1.bf16.msra.mxu0 0
        %925 = vmatprep.mubr.bf16.mxu0 0
        %926 = vmatmul.mubr.bf16.gmra.mrb[0].mxu0 %v891
        %v927 = vpop.f32.mrb[0].mxu0
        %v928 = vadd.f32 0.0, %v927
        %v929 = vpop.f32.mrb[0].mxu0
        %v930 = vpop.f32.mrb[0].mxu0
        %v931 = vpop.f32.mrb[0].mxu0
        %932 = vdwg.mxu0
        %v933 = vpack.c.bf16 %v928, %v928
        %vm934 = vcmask 257024
        %935 = vst.msk [vmem:[#allocation3] sm:$0xf] %vm934, %v933
        %937 = vrot.lane.b32.xlu0 %v827, 96
        %v938 = vpop.permute.xlu0 %937
        %940 = vrot.lane.b32.xlu0 %v828, 96
        %v941 = vpop.permute.xlu0 %940
        %v943 = vsel %vm830, %v938, 0
        %v946 = vsel %vm830, %v941, 0
        %948 = vmatprep.subr.bf16.mxu0 0
        %949 = vmatpush1.bf16.xpose.msra.mxu0 %v946
        %950 = vmatprep.subr.bf16.mxu0 0
        %951 = vmatpush1.bf16.xpose.msra.mxu0 0
        %952 = vmatprep.subr.bf16.mxu0 0
        %953 = vmatpush1.bf16.xpose.msra.mxu0 0
        %954 = vmatprep.subr.bf16.mxu0 0
        %955 = vmatpush1.bf16.xpose.msra.mxu0 0
        %956 = vmatprep.subr.bf16.mxu0 0
        %957 = vmatpush1.bf16.xpose.msra.mxu0 0
        %958 = vmatprep.subr.bf16.mxu0 0
        %959 = vmatpush1.bf16.xpose.msra.mxu0 0
        %960 = vmatprep.subr.bf16.mxu0 0
        %961 = vmatpush1.bf16.xpose.msra.mxu0 0
        %962 = vmatprep.subr.bf16.mxu0 0
        %963 = vmatpush1.bf16.xpose.msra.mxu0 0
        %964 = vmatprep.subr.bf16.mxu0 0
        %965 = vmatpush1.bf16.xpose.msra.mxu0 0
        %966 = vmatprep.subr.bf16.mxu0 0
        %967 = vmatpush1.bf16.xpose.msra.mxu0 0
        %968 = vmatprep.subr.bf16.mxu0 0
        %969 = vmatpush1.bf16.xpose.msra.mxu0 0
        %970 = vmatprep.subr.bf16.mxu0 0
        %971 = vmatpush1.bf16.xpose.msra.mxu0 0
        %972 = vmatprep.subr.bf16.mxu0 0
        %973 = vmatpush1.bf16.xpose.msra.mxu0 0
        %974 = vmatprep.subr.bf16.mxu0 0
        %975 = vmatpush1.bf16.xpose.msra.mxu0 0
        %976 = vmatprep.subr.bf16.mxu0 0
        %977 = vmatpush1.bf16.xpose.msra.mxu0 0
        %978 = vmatprep.subr.bf16.mxu0 0
        %979 = vmatpush1.bf16.xpose.msra.mxu0 0
        %980 = vmatprep.mubr.bf16.mxu0 0
        %981 = vmatmul.mubr.bf16.gmra.mrb[0].mxu0 %v943
        %v982 = vpop.f32.mrb[0].mxu0
        %v983 = vadd.f32 %v826, %v982
        %v984 = vpop.f32.mrb[0].mxu0
        %v985 = vpop.f32.mrb[0].mxu0
        %v986 = vpop.f32.mrb[0].mxu0
        %987 = vdwg.mxu0
        %v988 = vsel %vm877, %v983, -inf
        %989 = vmax.xlane.f32.xlu0 %v988
        %v990 = vpop.xlane.xlu0 %989
        %v991 = vsub.f32 %v983, %v990
        %v992 = vmul.f32 %v991, 1.442695
        %v993 = vpow.pop %v992
        %v994 = vsel %vm877, %v993, 0.0
        %995 = vadd.xlane.f32.xlu0 %v994
        %v996 = vpop.xlane.xlu0 %995
        %v997 = vrcp.pop %v996
        %v998 = vmul.f32 %v993, %v997
        %v999 = vpack.c.bf16 %v998, %v998
        %1001 = vrot.lane.b32.xlu0 %v829, 96
        %v1002 = vpop.permute.xlu0 %1001
        %v1005 = vsel %vm877, %v999, 0
        %1007 = vmatprep.subr.bf16.mxu0 0
        %1008 = vmatpush1.bf16.msra.mxu0 %v1002
        %1009 = vmatprep.subr.bf16.mxu0 0
        %1010 = vmatpush1.bf16.msra.mxu0 0
        %1011 = vmatprep.subr.bf16.mxu0 0
        %1012 = vmatpush1.bf16.msra.mxu0 0
        %1013 = vmatprep.subr.bf16.mxu0 0
        %1014 = vmatpush1.bf16.msra.mxu0 0
        %1015 = vmatprep.subr.bf16.mxu0 0
        %1016 = vmatpush1.bf16.msra.mxu0 0
        %1017 = vmatprep.subr.bf16.mxu0 0
        %1018 = vmatpush1.bf16.msra.mxu0 0
        %1019 = vmatprep.subr.bf16.mxu0 0
        %1020 = vmatpush1.bf16.msra.mxu0 0
        %1021 = vmatprep.subr.bf16.mxu0 0
        %1022 = vmatpush1.bf16.msra.mxu0 0
        %1023 = vmatprep.subr.bf16.mxu0 0
        %1024 = vmatpush1.bf16.msra.mxu0 0
        %1025 = vmatprep.subr.bf16.mxu0 0
        %1026 = vmatpush1.bf16.msra.mxu0 0
        %1027 = vmatprep.subr.bf16.mxu0 0
        %1028 = vmatpush1.bf16.msra.mxu0 0
        %1029 = vmatprep.subr.bf16.mxu0 0
        %1030 = vmatpush1.bf16.msra.mxu0 0
        %1031 = vmatprep.subr.bf16.mxu0 0
        %1032 = vmatpush1.bf16.msra.mxu0 0
        %1033 = vmatprep.subr.bf16.mxu0 0
        %1034 = vmatpush1.bf16.msra.mxu0 0
        %1035 = vmatprep.subr.bf16.mxu0 0
        %1036 = vmatpush1.bf16.msra.mxu0 0
        %1037 = vmatprep.subr.bf16.mxu0 0
        %1038 = vmatpush1.bf16.msra.mxu0 0
        %1039 = vmatprep.mubr.bf16.mxu0 0
        %1040 = vmatmul.mubr.bf16.gmra.mrb[0].mxu0 %v1005
        %v1041 = vpop.f32.mrb[0].mxu0
        %v1042 = vadd.f32 0.0, %v1041
        %v1043 = vpop.f32.mrb[0].mxu0
        %v1044 = vpop.f32.mrb[0].mxu0
        %v1045 = vpop.f32.mrb[0].mxu0
        %1046 = vdwg.mxu0
        %v1047 = vpack.c.bf16 %v1042, %v1042
        %v1049 = vunpack.c.l.b16 %v1047
        %v1050 = vpack.c.b16 %v1049, %v1049
        %1051 = vrot.lane.b32.xlu0 %v1050, 32
        %v1052 = vpop.permute.xlu0 %1051
        %vm1054 = vcmask 519424
        %1055 = vst.msk [vmem:[#allocation3] sm:$0xf] %vm1054, %v1052
        %1056 = vrot.lane.b32.xlu0 %v827, 64
        %v1057 = vpop.permute.xlu0 %1056
        %1058 = vrot.lane.b32.xlu0 %v828, 64
        %v1059 = vpop.permute.xlu0 %1058
        %v1061 = vsel %vm830, %v1057, 0
        %v1064 = vsel %vm830, %v1059, 0
        %1066 = vmatprep.subr.bf16.mxu0 0
        %1067 = vmatpush1.bf16.xpose.msra.mxu0 %v1064
        %1068 = vmatprep.subr.bf16.mxu0 0
        %1069 = vmatpush1.bf16.xpose.msra.mxu0 0
        %1070 = vmatprep.subr.bf16.mxu0 0
        %1071 = vmatpush1.bf16.xpose.msra.mxu0 0
        %1072 = vmatprep.subr.bf16.mxu0 0
        %1073 = vmatpush1.bf16.xpose.msra.mxu0 0
        %1074 = vmatprep.subr.bf16.mxu0 0
        %1075 = vmatpush1.bf16.xpose.msra.mxu0 0
        %1076 = vmatprep.subr.bf16.mxu0 0
        %1077 = vmatpush1.bf16.xpose.msra.mxu0 0
        %1078 = vmatprep.subr.bf16.mxu0 0
        %1079 = vmatpush1.bf16.xpose.msra.mxu0 0
        %1080 = vmatprep.subr.bf16.mxu0 0
        %1081 = vmatpush1.bf16.xpose.msra.mxu0 0
        %1082 = vmatprep.subr.bf16.mxu0 0
        %1083 = vmatpush1.bf16.xpose.msra.mxu0 0
        %1084 = vmatprep.subr.bf16.mxu0 0
        %1085 = vmatpush1.bf16.xpose.msra.mxu0 0
        %1086 = vmatprep.subr.bf16.mxu0 0
        %1087 = vmatpush1.bf16.xpose.msra.mxu0 0
        %1088 = vmatprep.subr.bf16.mxu0 0
        %1089 = vmatpush1.bf16.xpose.msra.mxu0 0
        %1090 = vmatprep.subr.bf16.mxu0 0
        %1091 = vmatpush1.bf16.xpose.msra.mxu0 0
        %1092 = vmatprep.subr.bf16.mxu0 0
        %1093 = vmatpush1.bf16.xpose.msra.mxu0 0
        %1094 = vmatprep.subr.bf16.mxu0 0
        %1095 = vmatpush1.bf16.xpose.msra.mxu0 0
        %1096 = vmatprep.subr.bf16.mxu0 0
        %1097 = vmatpush1.bf16.xpose.msra.mxu0 0
        %1098 = vmatprep.mubr.bf16.mxu0 0
        %1099 = vmatmul.mubr.bf16.gmra.mrb[0].mxu0 %v1061
        %v1100 = vpop.f32.mrb[0].mxu0
        %v1101 = vadd.f32 %v826, %v1100
        %v1102 = vpop.f32.mrb[0].mxu0
        %v1103 = vpop.f32.mrb[0].mxu0
        %v1104 = vpop.f32.mrb[0].mxu0
        %1105 = vdwg.mxu0
        %v1106 = vsel %vm877, %v1101, -inf
        %1107 = vmax.xlane.f32.xlu0 %v1106
        %v1108 = vpop.xlane.xlu0 %1107
        %v1109 = vsub.f32 %v1101, %v1108
        %v1110 = vmul.f32 %v1109, 1.442695
        %v1111 = vpow.pop %v1110
        %v1112 = vsel %vm877, %v1111, 0.0
        %1113 = vadd.xlane.f32.xlu0 %v1112
        %v1114 = vpop.xlane.xlu0 %1113
        %v1115 = vrcp.pop %v1114
        %v1116 = vmul.f32 %v1111, %v1115
        %v1117 = vpack.c.bf16 %v1116, %v1116
        %1118 = vrot.lane.b32.xlu0 %v829, 64
        %v1119 = vpop.permute.xlu0 %1118
        %v1122 = vsel %vm877, %v1117, 0
        %1124 = vmatprep.subr.bf16.mxu0 0
        %1125 = vmatpush1.bf16.msra.mxu0 %v1119
        %1126 = vmatprep.subr.bf16.mxu0 0
        %1127 = vmatpush1.bf16.msra.mxu0 0
        %1128 = vmatprep.subr.bf16.mxu0 0
        %1129 = vmatpush1.bf16.msra.mxu0 0
        %1130 = vmatprep.subr.bf16.mxu0 0
        %1131 = vmatpush1.bf16.msra.mxu0 0
        %1132 = vmatprep.subr.bf16.mxu0 0
        %1133 = vmatpush1.bf16.msra.mxu0 0
        %1134 = vmatprep.subr.bf16.mxu0 0
        %1135 = vmatpush1.bf16.msra.mxu0 0
        %1136 = vmatprep.subr.bf16.mxu0 0
        %1137 = vmatpush1.bf16.msra.mxu0 0
        %1138 = vmatprep.subr.bf16.mxu0 0
        %1139 = vmatpush1.bf16.msra.mxu0 0
        %1140 = vmatprep.subr.bf16.mxu0 0
        %1141 = vmatpush1.bf16.msra.mxu0 0
        %1142 = vmatprep.subr.bf16.mxu0 0
        %1143 = vmatpush1.bf16.msra.mxu0 0
        %1144 = vmatprep.subr.bf16.mxu0 0
        %1145 = vmatpush1.bf16.msra.mxu0 0
        %1146 = vmatprep.subr.bf16.mxu0 0
        %1147 = vmatpush1.bf16.msra.mxu0 0
        %1148 = vmatprep.subr.bf16.mxu0 0
        %1149 = vmatpush1.bf16.msra.mxu0 0
        %1150 = vmatprep.subr.bf16.mxu0 0
        %1151 = vmatpush1.bf16.msra.mxu0 0
        %1152 = vmatprep.subr.bf16.mxu0 0
        %1153 = vmatpush1.bf16.msra.mxu0 0
        %1154 = vmatprep.subr.bf16.mxu0 0
        %1155 = vmatpush1.bf16.msra.mxu0 0
        %1156 = vmatprep.mubr.bf16.mxu0 0
        %1157 = vmatmul.mubr.bf16.gmra.mrb[0].mxu0 %v1122
        %v1158 = vpop.f32.mrb[0].mxu0
        %v1159 = vadd.f32 0.0, %v1158
        %v1160 = vpop.f32.mrb[0].mxu0
        %v1161 = vpop.f32.mrb[0].mxu0
        %v1162 = vpop.f32.mrb[0].mxu0
        %1163 = vdwg.mxu0
        %v1164 = vpack.c.bf16 %v1159, %v1159
        %v1166 = vunpack.c.l.b16 %v1164
        %v1167 = vpack.c.b16 %v1166, %v1166
        %1168 = vrot.lane.b32.xlu0 %v1167, 64
        %v1169 = vpop.permute.xlu0 %1168
        %vm1171 = vcmask 781824
        %1172 = vst.msk [vmem:[#allocation3] sm:$0xf] %vm1171, %v1169
        %1173 = vrot.lane.b32.xlu0 %v827, 32
        %v1174 = vpop.permute.xlu0 %1173
        %1175 = vrot.lane.b32.xlu0 %v828, 32
        %v1176 = vpop.permute.xlu0 %1175
        %v1178 = vsel %vm830, %v1174, 0
        %v1181 = vsel %vm830, %v1176, 0
        %1183 = vmatprep.subr.bf16.mxu0 0
        %1184 = vmatpush1.bf16.xpose.msra.mxu0 %v1181
        %1185 = vmatprep.subr.bf16.mxu0 0
        %1186 = vmatpush1.bf16.xpose.msra.mxu0 0
        %1187 = vmatprep.subr.bf16.mxu0 0
        %1188 = vmatpush1.bf16.xpose.msra.mxu0 0
        %1189 = vmatprep.subr.bf16.mxu0 0
        %1190 = vmatpush1.bf16.xpose.msra.mxu0 0
        %1191 = vmatprep.subr.bf16.mxu0 0
        %1192 = vmatpush1.bf16.xpose.msra.mxu0 0
        %1193 = vmatprep.subr.bf16.mxu0 0
        %1194 = vmatpush1.bf16.xpose.msra.mxu0 0
        %1195 = vmatprep.subr.bf16.mxu0 0
        %1196 = vmatpush1.bf16.xpose.msra.mxu0 0
        %1197 = vmatprep.subr.bf16.mxu0 0
        %1198 = vmatpush1.bf16.xpose.msra.mxu0 0
        %1199 = vmatprep.subr.bf16.mxu0 0
        %1200 = vmatpush1.bf16.xpose.msra.mxu0 0
        %1201 = vmatprep.subr.bf16.mxu0 0
        %1202 = vmatpush1.bf16.xpose.msra.mxu0 0
        %1203 = vmatprep.subr.bf16.mxu0 0
        %1204 = vmatpush1.bf16.xpose.msra.mxu0 0
        %1205 = vmatprep.subr.bf16.mxu0 0
        %1206 = vmatpush1.bf16.xpose.msra.mxu0 0
        %1207 = vmatprep.subr.bf16.mxu0 0
        %1208 = vmatpush1.bf16.xpose.msra.mxu0 0
        %1209 = vmatprep.subr.bf16.mxu0 0
        %1210 = vmatpush1.bf16.xpose.msra.mxu0 0
        %1211 = vmatprep.subr.bf16.mxu0 0
        %1212 = vmatpush1.bf16.xpose.msra.mxu0 0
        %1213 = vmatprep.subr.bf16.mxu0 0
        %1214 = vmatpush1.bf16.xpose.msra.mxu0 0
        %1215 = vmatprep.mubr.bf16.mxu0 0
        %1216 = vmatmul.mubr.bf16.gmra.mrb[0].mxu0 %v1178
        %v1217 = vpop.f32.mrb[0].mxu0
        %v1218 = vadd.f32 %v826, %v1217
        %v1219 = vpop.f32.mrb[0].mxu0
        %v1220 = vpop.f32.mrb[0].mxu0
        %v1221 = vpop.f32.mrb[0].mxu0
        %1222 = vdwg.mxu0
        %v1223 = vsel %vm877, %v1218, -inf
        %1224 = vmax.xlane.f32.xlu0 %v1223
        %v1225 = vpop.xlane.xlu0 %1224
        %v1226 = vsub.f32 %v1218, %v1225
        %v1227 = vmul.f32 %v1226, 1.442695
        %v1228 = vpow.pop %v1227
        %v1229 = vsel %vm877, %v1228, 0.0
        %1230 = vadd.xlane.f32.xlu0 %v1229
        %v1231 = vpop.xlane.xlu0 %1230
        %v1232 = vrcp.pop %v1231
        %v1233 = vmul.f32 %v1228, %v1232
        %v1234 = vpack.c.bf16 %v1233, %v1233
        %1235 = vrot.lane.b32.xlu0 %v829, 32
        %v1236 = vpop.permute.xlu0 %1235
        %v1239 = vsel %vm877, %v1234, 0
        %1241 = vmatprep.subr.bf16.mxu0 0
        %1242 = vmatpush1.bf16.msra.mxu0 %v1236
        %1243 = vmatprep.subr.bf16.mxu0 0
        %1244 = vmatpush1.bf16.msra.mxu0 0
        %1245 = vmatprep.subr.bf16.mxu0 0
        %1246 = vmatpush1.bf16.msra.mxu0 0
        %1247 = vmatprep.subr.bf16.mxu0 0
        %1248 = vmatpush1.bf16.msra.mxu0 0
        %1249 = vmatprep.subr.bf16.mxu0 0
        %1250 = vmatpush1.bf16.msra.mxu0 0
        %1251 = vmatprep.subr.bf16.mxu0 0
        %1252 = vmatpush1.bf16.msra.mxu0 0
        %1253 = vmatprep.subr.bf16.mxu0 0
        %1254 = vmatpush1.bf16.msra.mxu0 0
        %1255 = vmatprep.subr.bf16.mxu0 0
        %1256 = vmatpush1.bf16.msra.mxu0 0
        %1257 = vmatprep.subr.bf16.mxu0 0
        %1258 = vmatpush1.bf16.msra.mxu0 0
        %1259 = vmatprep.subr.bf16.mxu0 0
        %1260 = vmatpush1.bf16.msra.mxu0 0
        %1261 = vmatprep.subr.bf16.mxu0 0
        %1262 = vmatpush1.bf16.msra.mxu0 0
        %1263 = vmatprep.subr.bf16.mxu0 0
        %1264 = vmatpush1.bf16.msra.mxu0 0
        %1265 = vmatprep.subr.bf16.mxu0 0
        %1266 = vmatpush1.bf16.msra.mxu0 0
        %1267 = vmatprep.subr.bf16.mxu0 0
        %1268 = vmatpush1.bf16.msra.mxu0 0
        %1269 = vmatprep.subr.bf16.mxu0 0
        %1270 = vmatpush1.bf16.msra.mxu0 0
        %1271 = vmatprep.subr.bf16.mxu0 0
        %1272 = vmatpush1.bf16.msra.mxu0 0
        %1273 = vmatprep.mubr.bf16.mxu0 0
        %1274 = vmatmul.mubr.bf16.gmra.mrb[0].mxu0 %v1239
        %v1275 = vpop.f32.mrb[0].mxu0
        %v1276 = vadd.f32 0.0, %v1275
        %v1277 = vpop.f32.mrb[0].mxu0
        %v1278 = vpop.f32.mrb[0].mxu0
        %v1279 = vpop.f32.mrb[0].mxu0
        %1280 = vdwg.mxu0
        %v1281 = vpack.c.bf16 %v1276, %v1276
        %v1283 = vunpack.c.l.b16 %v1281
        %v1284 = vpack.c.b16 %v1283, %v1283
        %1285 = vrot.lane.b32.xlu0 %v1284, 96
        %v1286 = vpop.permute.xlu0 %1285
        %vm1288 = vcmask 1044224
        %1289 = vst.msk [vmem:[#allocation3] sm:$0xf] %vm1288, %v1286
        %v1290 = vld [vmem:[#allocation3] sm:$0xf]
        %v1291 = vld [vmem:[#allocation9] sm:$0xf]
        %v1292 = vld [vmem:[#allocation9 + $0x4] sm:$0xf]
        %v1293 = vld [vmem:[#allocation9 + $0x8] sm:$0xf]
        %v1294 = vld [vmem:[#allocation9 + $0xc] sm:$0xf]
        %v1295 = vld [vmem:[#allocation9 + $0x10] sm:$0xf]
        %v1296 = vld [vmem:[#allocation9 + $0x14] sm:$0xf]
        %v1297 = vld [vmem:[#allocation9 + $0x18] sm:$0xf]
        %v1298 = vld [vmem:[#allocation9 + $0x1c] sm:$0xf]
        %v1299 = vld [vmem:[#allocation9 + $0x20] sm:$0xf]
        %v1300 = vld [vmem:[#allocation9 + $0x24] sm:$0xf]
        %v1301 = vld [vmem:[#allocation9 + $0x28] sm:$0xf]
        %v1302 = vld [vmem:[#allocation9 + $0x2c] sm:$0xf]
        %v1303 = vld [vmem:[#allocation9 + $0x30] sm:$0xf]
        %v1304 = vld [vmem:[#allocation9 + $0x34] sm:$0xf]
        %v1305 = vld [vmem:[#allocation9 + $0x38] sm:$0xf]
        %v1306 = vld [vmem:[#allocation9 + $0x3c] sm:$0xf]
        %v1307 = vld [vmem:[%s6] sm:$0x1]
        %v1309 = vlaneseq
        %v1310 = vshrl.u32 %v1309, 7
        %v1311 = vsub.s32 0, %v1310
        %v1312 = vrot.slane %v1307, %v1311
        %v1330 = vunpack.c.l.b16 %v1291
        %v1331 = vunpack.c.l.b16 %v1292
        %v1332 = vunpack.c.l.b16 %v1293
        %v1333 = vunpack.c.l.b16 %v1294
        %v1334 = vunpack.c.l.b16 %v1295
        %v1335 = vunpack.c.l.b16 %v1296
        %v1336 = vunpack.c.l.b16 %v1297
        %v1337 = vunpack.c.l.b16 %v1298
        %v1338 = vunpack.c.l.b16 %v1299
        %v1339 = vunpack.c.l.b16 %v1300
        %v1340 = vunpack.c.l.b16 %v1301
        %v1341 = vunpack.c.l.b16 %v1302
        %v1342 = vunpack.c.l.b16 %v1303
        %v1343 = vunpack.c.l.b16 %v1304
        %v1344 = vunpack.c.l.b16 %v1305
        %v1345 = vunpack.c.l.b16 %v1306
        %v1346 = vpack.c.b16 %v1331, %v1330
        %v1347 = vpack.c.b16 %v1333, %v1332
        %v1348 = vpack.c.b16 %v1335, %v1334
        %v1349 = vpack.c.b16 %v1337, %v1336
        %v1350 = vpack.c.b16 %v1339, %v1338
        %v1351 = vpack.c.b16 %v1341, %v1340
        %v1352 = vpack.c.b16 %v1343, %v1342
        %v1353 = vpack.c.b16 %v1345, %v1344
        %1362 = vmatprep.subr.bf16.mxu0 0
        %1363 = vmatpush1.bf16.msra.mxu0 %v1346
        %1364 = vmatprep.subr.bf16.mxu0 0
        %1365 = vmatpush1.bf16.msra.mxu0 %v1347
        %1366 = vmatprep.subr.bf16.mxu0 0
        %1367 = vmatpush1.bf16.msra.mxu0 %v1348
        %1368 = vmatprep.subr.bf16.mxu0 0
        %1369 = vmatpush1.bf16.msra.mxu0 %v1349
        %1370 = vmatprep.subr.bf16.mxu0 0
        %1371 = vmatpush1.bf16.msra.mxu0 %v1350
        %1372 = vmatprep.subr.bf16.mxu0 0
        %1373 = vmatpush1.bf16.msra.mxu0 %v1351
        %1374 = vmatprep.subr.bf16.mxu0 0
        %1375 = vmatpush1.bf16.msra.mxu0 %v1352
        %1376 = vmatprep.subr.bf16.mxu0 0
        %1377 = vmatpush1.bf16.msra.mxu0 %v1353
        %1378 = vmatprep.subr.bf16.mxu0 0
        %1379 = vmatpush1.bf16.msra.mxu0 0
        %1380 = vmatprep.subr.bf16.mxu0 0
        %1381 = vmatpush1.bf16.msra.mxu0 0
        %1382 = vmatprep.subr.bf16.mxu0 0
        %1383 = vmatpush1.bf16.msra.mxu0 0
        %1384 = vmatprep.subr.bf16.mxu0 0
        %1385 = vmatpush1.bf16.msra.mxu0 0
        %1386 = vmatprep.subr.bf16.mxu0 0
        %1387 = vmatpush1.bf16.msra.mxu0 0
        %1388 = vmatprep.subr.bf16.mxu0 0
        %1389 = vmatpush1.bf16.msra.mxu0 0
        %1390 = vmatprep.subr.bf16.mxu0 0
        %1391 = vmatpush1.bf16.msra.mxu0 0
        %1392 = vmatprep.subr.bf16.mxu0 0
        %1393 = vmatpush1.bf16.msra.mxu0 0
        %1394 = vmatprep.mubr.bf16.mxu0 0
        %1395 = vmatmul.mubr.bf16.gmra.mrb[0].mxu0 %v1290
        %v1396 = vpop.f32.mrb[0].mxu0
        %v1397 = vadd.f32 %v1312, %v1396
        %v1398 = vpop.f32.mrb[0].mxu0
        %v1399 = vpop.f32.mrb[0].mxu0
        %v1400 = vpop.f32.mrb[0].mxu0
        %1401 = vdwg.mxu0
        %v1402 = vadd.f32 %v534, %v1397
        %v1403 = vld [vmem:[%s7] sm:$0x1]
        %v1404 = vld [vmem:[%s8] sm:$0x1]
        %1405 = vadd.xlane.f32.xlu0 %v1402
        %v1406 = vpop.xlane.xlu0 %1405
        %v1407 = vmul.f32 %v1406, %v542
        %v1408 = vsub.f32 %v1402, %v1407
        %v1409 = vmul.f32 %v1408, %v1408
        %1410 = vadd.xlane.f32.xlu0 %v1409
        %v1411 = vpop.xlane.xlu0 %1410
        %v1412 = vmul.f32 %v1411, %v542
        %v1413 = vadd.f32 %v1412, 1e-05
        %v1414 = vrsqrt.pop %v1413
        %v1415 = vmul.f32 %v1408, %v1414
        %v1417 = vlaneseq
        %v1418 = vshrl.u32 %v1417, 7
        %v1419 = vsub.s32 0, %v1418
        %v1420 = vrot.slane %v1403, %v1419
        %v1422 = vmul.f32 %v1415, %v1420
        %v1424 = vlaneseq
        %v1425 = vshrl.u32 %v1424, 7
        %v1426 = vsub.s32 0, %v1425
        %v1427 = vrot.slane %v1404, %v1426
        %v1429 = vadd.f32 %v1422, %v1427
        %v1430 = vpack.c.bf16 %v1429, %v1429
        %v1431 = vld [vmem:[#allocation10] sm:$0xff]
        %v1432 = vld [vmem:[#allocation10 + $0x8] sm:$0xff]
        %v1433 = vld [vmem:[#allocation10 + $0x10] sm:$0xff]
        %v1434 = vld [vmem:[#allocation10 + $0x18] sm:$0xff]
        %v1435 = vld [vmem:[#allocation10 + $0x20] sm:$0xff]
        %v1436 = vld [vmem:[#allocation10 + $0x28] sm:$0xff]
        %v1437 = vld [vmem:[#allocation10 + $0x30] sm:$0xff]
        %v1438 = vld [vmem:[#allocation10 + $0x38] sm:$0xff]
        %v1439 = vld [vmem:[#allocation10 + $0x40] sm:$0xff]
        %v1440 = vld [vmem:[#allocation10 + $0x48] sm:$0xff]
        %v1441 = vld [vmem:[#allocation10 + $0x50] sm:$0xff]
        %v1442 = vld [vmem:[#allocation10 + $0x58] sm:$0xff]
        %v1443 = vld [vmem:[#allocation10 + $0x60] sm:$0xff]
        %v1444 = vld [vmem:[#allocation10 + $0x68] sm:$0xff]
        %v1445 = vld [vmem:[#allocation10 + $0x70] sm:$0xff]
        %v1446 = vld [vmem:[#allocation10 + $0x78] sm:$0xff]
        %v1447 = vld [vmem:[%s10] sm:$0x3]
        %v1449 = vlaneseq
        %v1450 = vshrl.u32 %v1449, 7
        %v1451 = vsub.s32 0, %v1450
        %v1452 = vrot.slane %v1447, %v1451
        %v1453 = vlaneseq
        %v1454 = vshrl.u32 %v1453, 7
        %v1455 = vsub.s32 1, %v1454
        %v1456 = vrot.slane %v1447, %v1455
        %v1475 = vunpack.c.l.b16 %v1431
        %v1476 = vunpack.c.h.b16 %v1431
        %v1477 = vunpack.c.l.b16 %v1432
        %v1478 = vunpack.c.h.b16 %v1432
        %v1479 = vunpack.c.l.b16 %v1433
        %v1480 = vunpack.c.h.b16 %v1433
        %v1481 = vunpack.c.l.b16 %v1434
        %v1482 = vunpack.c.h.b16 %v1434
        %v1483 = vunpack.c.l.b16 %v1435
        %v1484 = vunpack.c.h.b16 %v1435
        %v1485 = vunpack.c.l.b16 %v1436
        %v1486 = vunpack.c.h.b16 %v1436
        %v1487 = vunpack.c.l.b16 %v1437
        %v1488 = vunpack.c.h.b16 %v1437
        %v1489 = vunpack.c.l.b16 %v1438
        %v1490 = vunpack.c.h.b16 %v1438
        %v1491 = vunpack.c.l.b16 %v1439
        %v1492 = vunpack.c.h.b16 %v1439
        %v1493 = vunpack.c.l.b16 %v1440
        %v1494 = vunpack.c.h.b16 %v1440
        %v1495 = vunpack.c.l.b16 %v1441
        %v1496 = vunpack.c.h.b16 %v1441
        %v1497 = vunpack.c.l.b16 %v1442
        %v1498 = vunpack.c.h.b16 %v1442
        %v1499 = vunpack.c.l.b16 %v1443
        %v1500 = vunpack.c.h.b16 %v1443
        %v1501 = vunpack.c.l.b16 %v1444
        %v1502 = vunpack.c.h.b16 %v1444
        %v1503 = vunpack.c.l.b16 %v1445
        %v1504 = vunpack.c.h.b16 %v1445
        %v1505 = vunpack.c.l.b16 %v1446
        %v1506 = vunpack.c.h.b16 %v1446
        %v1507 = vpack.c.b16 %v1477, %v1475
        %v1508 = vpack.c.b16 %v1478, %v1476
        %v1509 = vpack.c.b16 %v1481, %v1479
        %v1510 = vpack.c.b16 %v1482, %v1480
        %v1511 = vpack.c.b16 %v1485, %v1483
        %v1512 = vpack.c.b16 %v1486, %v1484
        %v1513 = vpack.c.b16 %v1489, %v1487
        %v1514 = vpack.c.b16 %v1490, %v1488
        %v1515 = vpack.c.b16 %v1493, %v1491
        %v1516 = vpack.c.b16 %v1494, %v1492
        %v1517 = vpack.c.b16 %v1497, %v1495
        %v1518 = vpack.c.b16 %v1498, %v1496
        %v1519 = vpack.c.b16 %v1501, %v1499
        %v1520 = vpack.c.b16 %v1502, %v1500
        %v1521 = vpack.c.b16 %v1505, %v1503
        %v1522 = vpack.c.b16 %v1506, %v1504
        %1539 = vmatprep.subr.bf16.mxu0 %v1508
        %1540 = vmatpush1.bf16.msra.mxu0 %v1507
        %1541 = vmatprep.subr.bf16.mxu0 %v1510
        %1542 = vmatpush1.bf16.msra.mxu0 %v1509
        %1543 = vmatprep.subr.bf16.mxu0 %v1512
        %1544 = vmatpush1.bf16.msra.mxu0 %v1511
        %1545 = vmatprep.subr.bf16.mxu0 %v1514
        %1546 = vmatpush1.bf16.msra.mxu0 %v1513
        %1547 = vmatprep.subr.bf16.mxu0 %v1516
        %1548 = vmatpush1.bf16.msra.mxu0 %v1515
        %1549 = vmatprep.subr.bf16.mxu0 %v1518
        %1550 = vmatpush1.bf16.msra.mxu0 %v1517
        %1551 = vmatprep.subr.bf16.mxu0 %v1520
        %1552 = vmatpush1.bf16.msra.mxu0 %v1519
        %1553 = vmatprep.subr.bf16.mxu0 %v1522
        %1554 = vmatpush1.bf16.msra.mxu0 %v1521
        %1555 = vmatprep.subr.bf16.mxu0 0
        %1556 = vmatpush1.bf16.msra.mxu0 0
        %1557 = vmatprep.subr.bf16.mxu0 0
        %1558 = vmatpush1.bf16.msra.mxu0 0
        %1559 = vmatprep.subr.bf16.mxu0 0
        %1560 = vmatpush1.bf16.msra.mxu0 0
        %1561 = vmatprep.subr.bf16.mxu0 0
        %1562 = vmatpush1.bf16.msra.mxu0 0
        %1563 = vmatprep.subr.bf16.mxu0 0
        %1564 = vmatpush1.bf16.msra.mxu0 0
        %1565 = vmatprep.subr.bf16.mxu0 0
        %1566 = vmatpush1.bf16.msra.mxu0 0
        %1567 = vmatprep.subr.bf16.mxu0 0
        %1568 = vmatpush1.bf16.msra.mxu0 0
        %1569 = vmatprep.subr.bf16.mxu0 0
        %1570 = vmatpush1.bf16.msra.mxu0 0
        %1571 = vmatprep.mubr.bf16.mxu0 0
        %1572 = vmatmul.mubr.bf16.gmra.mrb[0].mxu0 %v1430
        %v1573 = vpop.f32.mrb[0].mxu0
        %v1574 = vadd.f32 %v1452, %v1573
        %v1575 = vpop.f32.mrb[0].mxu0
        %v1576 = vadd.f32 %v1456, %v1575
        %v1577 = vpop.f32.mrb[0].mxu0
        %v1578 = vpop.f32.mrb[0].mxu0
        %1579 = vdwg.mxu0
        %v1580 = vmul.f32 %v1574, 0.5
        %v1581 = vmul.f32 %v1576, 0.5
        %v1582 = vmul.f32 %v1574, 0.044715
        %v1583 = vmul.f32 %v1576, 0.044715
        %v1584 = vmul.f32 %v1582, %v1574
        %v1585 = vmul.f32 %v1583, %v1576
        %v1586 = vmul.f32 %v1584, %v1574
        %v1587 = vmul.f32 %v1585, %v1576
        %v1588 = vadd.f32 %v1574, %v1586
        %v1589 = vadd.f32 %v1576, %v1587
        %v1590 = vmul.f32 %v1588, 0.7978846
        %v1591 = vmul.f32 %v1589, 0.7978846
        %v1592 = vtanh.pop %v1590
        %v1593 = vtanh.pop %v1591
        %v1594 = vadd.f32 %v1592, 1.0
        %v1595 = vadd.f32 %v1593, 1.0
        %v1596 = vmul.f32 %v1580, %v1594
        %v1597 = vmul.f32 %v1581, %v1595
        %v1598 = vpack.c.bf16 %v1596, %v1596
        %v1599 = vpack.c.bf16 %v1597, %v1597
        %v1600 = vld [vmem:[#allocation12] sm:$0xf]
        %v1601 = vld [vmem:[#allocation12 + $0x4] sm:$0xf]
        %v1602 = vld [vmem:[#allocation12 + $0x8] sm:$0xf]
        %v1603 = vld [vmem:[#allocation12 + $0xc] sm:$0xf]
        %v1604 = vld [vmem:[#allocation12 + $0x10] sm:$0xf]
        %v1605 = vld [vmem:[#allocation12 + $0x14] sm:$0xf]
        %v1606 = vld [vmem:[#allocation12 + $0x18] sm:$0xf]
        %v1607 = vld [vmem:[#allocation12 + $0x1c] sm:$0xf]
        %v1608 = vld [vmem:[#allocation12 + $0x20] sm:$0xf]
        %v1609 = vld [vmem:[#allocation12 + $0x24] sm:$0xf]
        %v1610 = vld [vmem:[#allocation12 + $0x28] sm:$0xf]
        %v1611 = vld [vmem:[#allocation12 + $0x2c] sm:$0xf]
        %v1612 = vld [vmem:[#allocation12 + $0x30] sm:$0xf]
        %v1613 = vld [vmem:[#allocation12 + $0x34] sm:$0xf]
        %v1614 = vld [vmem:[#allocation12 + $0x38] sm:$0xf]
        %v1615 = vld [vmem:[#allocation12 + $0x3c] sm:$0xf]
        %v1616 = vld [vmem:[#allocation12 + $0x40] sm:$0xf]
        %v1617 = vld [vmem:[#allocation12 + $0x44] sm:$0xf]
        %v1618 = vld [vmem:[#allocation12 + $0x48] sm:$0xf]
        %v1619 = vld [vmem:[#allocation12 + $0x4c] sm:$0xf]
        %v1620 = vld [vmem:[#allocation12 + $0x50] sm:$0xf]
        %v1621 = vld [vmem:[#allocation12 + $0x54] sm:$0xf]
        %v1622 = vld [vmem:[#allocation12 + $0x58] sm:$0xf]
        %v1623 = vld [vmem:[#allocation12 + $0x5c] sm:$0xf]
        %v1624 = vld [vmem:[#allocation12 + $0x60] sm:$0xf]
        %v1625 = vld [vmem:[#allocation12 + $0x64] sm:$0xf]
        %v1626 = vld [vmem:[#allocation12 + $0x68] sm:$0xf]
        %v1627 = vld [vmem:[#allocation12 + $0x6c] sm:$0xf]
        %v1628 = vld [vmem:[#allocation12 + $0x70] sm:$0xf]
        %v1629 = vld [vmem:[#allocation12 + $0x74] sm:$0xf]
        %v1630 = vld [vmem:[#allocation12 + $0x78] sm:$0xf]
        %v1631 = vld [vmem:[#allocation12 + $0x7c] sm:$0xf]
        %v1632 = vld [vmem:[%s12] sm:$0x1]
        %v1634 = vlaneseq
        %v1635 = vshrl.u32 %v1634, 7
        %v1636 = vsub.s32 0, %v1635
        %v1637 = vrot.slane %v1632, %v1636
        %v1671 = vunpack.c.l.b16 %v1600
        %v1672 = vunpack.c.l.b16 %v1601
        %v1673 = vunpack.c.l.b16 %v1602
        %v1674 = vunpack.c.l.b16 %v1603
        %v1675 = vunpack.c.l.b16 %v1604
        %v1676 = vunpack.c.l.b16 %v1605
        %v1677 = vunpack.c.l.b16 %v1606
        %v1678 = vunpack.c.l.b16 %v1607
        %v1679 = vunpack.c.l.b16 %v1608
        %v1680 = vunpack.c.l.b16 %v1609
        %v1681 = vunpack.c.l.b16 %v1610
        %v1682 = vunpack.c.l.b16 %v1611
        %v1683 = vunpack.c.l.b16 %v1612
        %v1684 = vunpack.c.l.b16 %v1613
        %v1685 = vunpack.c.l.b16 %v1614
        %v1686 = vunpack.c.l.b16 %v1615
        %v1687 = vunpack.c.l.b16 %v1616
        %v1688 = vunpack.c.l.b16 %v1617
        %v1689 = vunpack.c.l.b16 %v1618
        %v1690 = vunpack.c.l.b16 %v1619
        %v1691 = vunpack.c.l.b16 %v1620
        %v1692 = vunpack.c.l.b16 %v1621
        %v1693 = vunpack.c.l.b16 %v1622
        %v1694 = vunpack.c.l.b16 %v1623
        %v1695 = vunpack.c.l.b16 %v1624
        %v1696 = vunpack.c.l.b16 %v1625
        %v1697 = vunpack.c.l.b16 %v1626
        %v1698 = vunpack.c.l.b16 %v1627
        %v1699 = vunpack.c.l.b16 %v1628
        %v1700 = vunpack.c.l.b16 %v1629
        %v1701 = vunpack.c.l.b16 %v1630
        %v1702 = vunpack.c.l.b16 %v1631
        %v1703 = vpack.c.b16 %v1672, %v1671
        %v1704 = vpack.c.b16 %v1674, %v1673
        %v1705 = vpack.c.b16 %v1676, %v1675
        %v1706 = vpack.c.b16 %v1678, %v1677
        %v1707 = vpack.c.b16 %v1680, %v1679
        %v1708 = vpack.c.b16 %v1682, %v1681
        %v1709 = vpack.c.b16 %v1684, %v1683
        %v1710 = vpack.c.b16 %v1686, %v1685
        %v1711 = vpack.c.b16 %v1688, %v1687
        %v1712 = vpack.c.b16 %v1690, %v1689
        %v1713 = vpack.c.b16 %v1692, %v1691
        %v1714 = vpack.c.b16 %v1694, %v1693
        %v1715 = vpack.c.b16 %v1696, %v1695
        %v1716 = vpack.c.b16 %v1698, %v1697
        %v1717 = vpack.c.b16 %v1700, %v1699
        %v1718 = vpack.c.b16 %v1702, %v1701
        %1735 = vmatprep.subr.bf16.mxu0 0
        %1736 = vmatpush1.bf16.msra.mxu0 %v1703
        %1737 = vmatprep.subr.bf16.mxu0 0
        %1738 = vmatpush1.bf16.msra.mxu0 %v1704
        %1739 = vmatprep.subr.bf16.mxu0 0
        %1740 = vmatpush1.bf16.msra.mxu0 %v1705
        %1741 = vmatprep.subr.bf16.mxu0 0
        %1742 = vmatpush1.bf16.msra.mxu0 %v1706
        %1743 = vmatprep.subr.bf16.mxu0 0
        %1744 = vmatpush1.bf16.msra.mxu0 %v1707
        %1745 = vmatprep.subr.bf16.mxu0 0
        %1746 = vmatpush1.bf16.msra.mxu0 %v1708
        %1747 = vmatprep.subr.bf16.mxu0 0
        %1748 = vmatpush1.bf16.msra.mxu0 %v1709
        %1749 = vmatprep.subr.bf16.mxu0 0
        %1750 = vmatpush1.bf16.msra.mxu0 %v1710
        %1751 = vmatprep.subr.bf16.mxu0 0
        %1752 = vmatpush1.bf16.msra.mxu0 %v1711
        %1753 = vmatprep.subr.bf16.mxu0 0
        %1754 = vmatpush1.bf16.msra.mxu0 %v1712
        %1755 = vmatprep.subr.bf16.mxu0 0
        %1756 = vmatpush1.bf16.msra.mxu0 %v1713
        %1757 = vmatprep.subr.bf16.mxu0 0
        %1758 = vmatpush1.bf16.msra.mxu0 %v1714
        %1759 = vmatprep.subr.bf16.mxu0 0
        %1760 = vmatpush1.bf16.msra.mxu0 %v1715
        %1761 = vmatprep.subr.bf16.mxu0 0
        %1762 = vmatpush1.bf16.msra.mxu0 %v1716
        %1763 = vmatprep.subr.bf16.mxu0 0
        %1764 = vmatpush1.bf16.msra.mxu0 %v1717
        %1765 = vmatprep.subr.bf16.mxu0 0
        %1766 = vmatpush1.bf16.msra.mxu0 %v1718
        %1767 = vmatprep.mubr.bf16.mxu0 %v1599
        %1768 = vmatmul.mubr.bf16.gmra.mrb[0].mxu0 %v1598
        %v1769 = vpop.f32.mrb[0].mxu0
        %v1770 = vadd.f32 %v1637, %v1769
        %v1771 = vpop.f32.mrb[0].mxu0
        %v1772 = vpop.f32.mrb[0].mxu0
        %v1773 = vpop.f32.mrb[0].mxu0
        %1774 = vdwg.mxu0
        %v1775 = vadd.f32 %v1402, %v1770
        %1776 = vst [vmem:[%s524] sm:$0xff] %v1775
        %s1777 = sand.u32 %s323, 1
        %s1778 = scalar_lea.sflag [#allocation6], %s1777
        %s1779 = sand.u32 %s323, 1
        %s1780 = smul.addr %s1779, 8
        %s1781 = scalar_lea.vmem [#allocation13], %s1780
        // Predicated region
        $region93: #{tpu_custom_call.1} parent=71 // pred_check
          %p1782 = pneg %p333
        $region94: #{tpu_custom_call.1} parent=71 // pred_check_branch
          %1784 = sbr.rel (%p1782) target = $region96
        $region95: #{tpu_custom_call.1} parent=71 // pred_region
          %s1786 = ssub.s32 128, 128
          %1787 = vsyncadd %s1778, %s1786
          %s1788 = smul.addr %s32, 128
          %s1789 = scalar_lea.hbm %s13, %s1788
          %s1791 = sshll.u32 %s1781, 4
          %s1792 = int_to_ptr.vmem [resolvable:$true] %s1791
          %1794 = dma.vmem_to_hbm [thread:$0]  %s1792, 128, %s1789, %s1778
        $region96: #{tpu_custom_call.1} parent=71 // pred_fallthru
          _
      $region72: #{tpu_custom_call.1} parent=5 // pred_fallthru
        _
      %p1795 = scmp.le.s32.totalorder 2, %s27
      // Predicated region
      $region97: #{tpu_custom_call.1} parent=5 // pred_check
        %p1796 = pneg %p1795
      $region98: #{tpu_custom_call.1} parent=5 // pred_check_branch
        %1798 = sbr.rel (%p1796) target = $region100
      $region99: #{tpu_custom_call.1} parent=5 // pred_region
        %s1799 = ssub.s32 %s27, 2
        // Predicated region
        $region101: #{tpu_custom_call.1} parent=99 // pred_check
          %p1800 = pneg %p339
        $region102: #{tpu_custom_call.1} parent=99 // pred_check_branch
          %1802 = sbr.rel (%p1800) target = $region104
        $region103: #{tpu_custom_call.1} parent=99 // pred_region
          %s1803 = sand.u32 %s324, 1
          %s1804 = scalar_lea.sflag [#allocation6], %s1803
          %s1805 = sand.u32 %s324, 1
          %s1806 = smul.addr %s1805, 8
          %s1807 = scalar_lea.vmem [#allocation13], %s1806
          %1808 = dma.done %s1804, 128
        $region104: #{tpu_custom_call.1} parent=99 // pred_fallthru
          _
      $region100: #{tpu_custom_call.1} parent=5 // pred_fallthru
        _
    $region6: #{tpu_custom_call.1} parent=1 // loop_footer
      %s31 = sadd.s32 1, %s27
    $region7: #{tpu_custom_call.1} parent=1 // loop_footer_branch
      %26 = sbr.rel target = $region3
    $region8: #{tpu_custom_call.1} parent=1 // loop_exit
      _
    %1809 = vsyncpa [#allocation5], 1
    %s1810 = scalar_lea.sflag [#allocation5], 1
    %1811 = vsyncpa %s1810, 1
    %1812 = vsyncpa [#allocation8], 1
    %1813 = vsyncpa [#allocation11], 1
    %1814 = vsyncpa [#allocation6], 1
    %s1815 = scalar_lea.sflag [#allocation6], 1
    %1816 = vsyncpa %s1815, 1

</llo_original>
